<compile_context>
chip_gen: v5e
topology: v5e:2x2
jax: 0.10.0
libtpu: 0.0.40
codegen_flags: <defaults>
</compile_context>

<pallas_src>
import functools

import jax
import jax.numpy as jnp
from jax.experimental import pallas as pl
from jax.experimental.pallas import tpu as pltpu


# ---------------------------------------------------------------------------
# Kernel
# ---------------------------------------------------------------------------
def _mfaab_kernel(x_ref,
                  m1_ref, b1_ref,
                  k3a_ref, b3a_ref, k3b_ref, b3b_ref,
                  k5a_ref, b5a_ref, k5b_ref, b5b_ref,
                  mf_ref, bf_ref, ml_ref, bl_ref,
                  o_ref, *, H):
    M, WC = x_ref.shape                        # (imgs_per_step*H, W*C=128)
    x = x_ref[...]

    # Hoisted per-image row-validity masks (row index modulo H), dy in [-2, 2].
    row_in_img = jax.lax.broadcasted_iota(jnp.int32, (M, WC), 0) % H
    row_valid = {dy: (row_in_img >= -dy) & (row_in_img < H - dy)
                 for dy in (-2, -1, 1, 2)}

    def row_shift(v, dy):
        # v[m] -> v[m + dy], zero padded per image (sublane roll on XLU).
        if dy == 0:
            return v
        r = pltpu.roll(v, shift=(-dy) % M, axis=0)
        return jnp.where(row_valid[dy], r, 0.0)

    def stack_rows(v, p):
        # (M, WC) -> (M, (2p+1)*WC) bf16, blocks ordered dy = -p..p.  The
        # matching weight matrix has the per-dy banded blocks stacked along K,
        # with lane (dx) shifts + width-border masks folded in host-side.
        return jnp.concatenate([row_shift(v, dy) for dy in range(-p, p + 1)],
                               axis=1).astype(jnp.bfloat16)

    def mm(a_bf16, w_ref, b_ref):
        # bf16 x bf16 MXU matmul with f32 accumulation + f32 bias.
        return jnp.dot(a_bf16, w_ref[...],
                       preferred_element_type=jnp.float32) + b_ref[...]

    # Shared row-shifted copies of x (branch 2's 3-stack is the middle of
    # branch 3's 5-stack).
    xm2 = row_shift(x, -2)
    xm1 = row_shift(x, -1)
    xp1 = row_shift(x, 1)
    xp2 = row_shift(x, 2)
    xs3 = jnp.concatenate([xm1, x, xp1], axis=1).astype(jnp.bfloat16)
    xs5 = jnp.concatenate([xm2, xm1, x, xp1, xp2], axis=1).astype(jnp.bfloat16)

    # branch 1: 1x1 conv (+folded BN, +folded sqrt(skip_scale_1)), self-gate.
    c1 = mm(x.astype(jnp.bfloat16), m1_ref, b1_ref)
    c1 = c1 * c1

    # branch 2: depthwise 3x3 + BN + ReLU, depthwise 3x3 + BN (+sqrt(s2)), gate.
    t3 = jnp.maximum(mm(xs3, k3a_ref, b3a_ref), 0.0)
    c3 = mm(stack_rows(t3, 1), k3b_ref, b3b_ref)
    c3 = c3 * c3

    # branch 3: depthwise 5x5 + BN + ReLU, depthwise 5x5 + BN (+sqrt(s3)), gate.
    t5 = jnp.maximum(mm(xs5, k5a_ref, b5a_ref), 0.0)
    c5 = mm(stack_rows(t5, 2), k5b_ref, b5b_ref)
    c5 = c5 * c5

    # fusion: dense 3x3 conv + BN + ReLU (single K=384 matmul).
    u = c1 + c3 + c5
    fused = jnp.maximum(mm(stack_rows(u, 1), mf_ref, bf_ref), 0.0)

    # final: exact sigmoid gate (EUP exp) + residual, then 1x1 conv + BN + ReLU.
    sig = 1.0 / (1.0 + jnp.exp(-x))
    pre = fused * sig + x
    out = jnp.maximum(mm(pre.astype(jnp.bfloat16), ml_ref, bl_ref), 0.0)
    o_ref[...] = out.astype(o_ref.dtype)


# ---------------------------------------------------------------------------
# Host-side weight packing into the lane-dense (W*C = 128) layout.
# ---------------------------------------------------------------------------
def pack_params(params, W, C):
    (scales, w1, b1, k3a, b3a, k3b, b3b,
     k5a, b5a, k5b, b5b, wf, bf, wl, bl) = params
    WC = W * C
    f32, bf16 = jnp.float32, jnp.bfloat16
    s1 = jnp.sqrt(scales[0])
    s2 = jnp.sqrt(scales[1])
    s3 = jnp.sqrt(scales[2])

    def shift_eye(dx):
        # (W_in, W_out) with ones where w_in == w_out + dx (border rows drop
        # out automatically -> width zero-padding is built into the weights).
        return jnp.eye(W, k=-dx, dtype=f32)

    def pack_bias(b, scale=1.0):                # (1,C) -> (1, W*C), f32
        return (scale * jnp.tile(b.reshape(1, C), (1, W))).astype(f32)

    def pack_1x1(w, scale=1.0):                 # (Cin,Cout) -> (WC, WC), bf16
        m = jnp.einsum('wv,io->wivo', jnp.eye(W, dtype=f32), w * scale)
        return m.reshape(WC, WC).astype(bf16)

    def pack_dw(k_flat, ks, scale=1.0):         # (ks*ks, C) -> (ks*WC, WC)
        p = ks // 2
        k = (k_flat * scale).reshape(ks, ks, C).astype(f32)
        blocks = []
        for iy in range(ks):                    # dy = iy - p
            m = jnp.zeros((WC, WC), f32)
            for ix in range(ks):                # dx = ix - p
                m = m + jnp.einsum('wv,io->wivo', shift_eye(ix - p),
                                   jnp.diag(k[iy, ix])).reshape(WC, WC)
            blocks.append(m)
        return jnp.concatenate(blocks, axis=0).astype(bf16)

    def pack_dense3(w):                         # (3,3,Cin,Cout) -> (3*WC, WC)
        blocks = []
        for iy in range(3):
            m = jnp.zeros((WC, WC), f32)
            for ix in range(3):
                m = m + jnp.einsum('wv,io->wivo', shift_eye(ix - 1),
                                   w[iy, ix].astype(f32)).reshape(WC, WC)
            blocks.append(m)
        return jnp.concatenate(blocks, axis=0).astype(bf16)

    return (pack_1x1(w1, s1), pack_bias(b1, s1),        # branch 1 (scale folded)
            pack_dw(k3a, 3), pack_bias(b3a),            # branch 2 conv a
            pack_dw(k3b, 3, s2), pack_bias(b3b, s2),    # branch 2 conv b (scale)
            pack_dw(k5a, 5), pack_bias(b5a),            # branch 3 conv a
            pack_dw(k5b, 5, s3), pack_bias(b5b, s3),    # branch 3 conv b (scale)
            pack_dense3(wf), pack_bias(bf),             # fusion 3x3
            pack_1x1(wl), pack_bias(bl))                # final 1x1


# ---------------------------------------------------------------------------
# Wrapper
# ---------------------------------------------------------------------------
def mfaab_forward(x_nhwc, params):
    """x_nhwc: (N, H, W, C) float32."""
    N, H, W, C = x_nhwc.shape
    WC = W * C
    assert WC % 128 == 0, "lane packing expects W*C to be a multiple of 128"

    (m1, b1, k3a, b3a, k3b, b3b,
     k5a, b5a, k5b, b5b, mf, bf, ml, bl) = pack_params(params, W, C)

    # Images per grid step: target M ~ 128 matmul rows while keeping >= 2 grid
    # steps (v7x two-TensorCore split) whenever N >= 2.
    max_ips = max(1, min(N // 2 if N >= 2 else 1, max(1, 128 // H)))
    ips = 1
    for d in range(max_ips, 0, -1):
        if N % d == 0:
            ips = d
            break
    G = N // ips
    M = ips * H
    assert M % 8 == 0

    x_packed = x_nhwc.reshape(G, M, WC)          # pure reshape, lane-packed

    def wspec(shape):
        return pl.BlockSpec(shape, lambda n, _nd=len(shape): (0,) * _nd)

    grid_spec = pltpu.PrefetchScalarGridSpec(
        num_scalar_prefetch=0,
        grid=(G,),
        in_specs=[
            pl.BlockSpec((None, M, WC), lambda n: (n, 0, 0)),   # x block
            wspec((WC, WC)), wspec((1, WC)),                    # conv1x1 (+BN)
            wspec((3 * WC, WC)), wspec((1, WC)),                # dw 3x3 #1
            wspec((3 * WC, WC)), wspec((1, WC)),                # dw 3x3 #2
            wspec((5 * WC, WC)), wspec((1, WC)),                # dw 5x5 #1
            wspec((5 * WC, WC)), wspec((1, WC)),                # dw 5x5 #2
            wspec((3 * WC, WC)), wspec((1, WC)),                # fusion 3x3
            wspec((WC, WC)), wspec((1, WC)),                    # final 1x1
        ],
        out_specs=pl.BlockSpec((None, M, WC), lambda n: (n, 0, 0)),
    )
    out = pl.pallas_call(
        functools.partial(_mfaab_kernel, H=H),
        out_shape=jax.ShapeDtypeStruct((G, M, WC), x_nhwc.dtype),
        grid_spec=grid_spec,
        compiler_params=pltpu.CompilerParams(
            dimension_semantics=("parallel",)),
    )(x_packed, m1, b1, k3a, b3a, k3b, b3b,
      k5a, b5a, k5b, b5b, mf, bf, ml, bl)
    return out.reshape(N, H, W, C)


# ---------------------------------------------------------------------------
# Deterministic parameter construction (eval-mode BN folded into conv w/b).
# ---------------------------------------------------------------------------
def make_params(key, C):
    it = iter(jax.random.split(key, 64))
    f32 = jnp.float32

    def nrm(shape, scale=0.15):
        return (scale * jax.random.normal(next(it), shape)).astype(f32)

    def bn_fold():
        gamma = (1.0 + nrm((C,), 0.1)).astype(f32)
        beta = nrm((C,), 0.1)
        mean = nrm((C,), 0.1)
        var = (1.0 + 0.2 * jax.random.uniform(next(it), (C,))).astype(f32)
        sc = gamma / jnp.sqrt(var + 1e-5)
        sh = beta - mean * sc
        return sc, sh

    def conv_bn(w_shape):
        # output channel is the LAST axis of w_shape
        w = nrm(w_shape)
        b = nrm((C,), 0.05)
        sc, sh = bn_fold()
        return (w * sc).astype(f32), (b * sc + sh).reshape(1, C).astype(f32)

    w1, b1 = conv_bn((C, C))            # Conv2d(C, C, 1)   [in, out]
    k3a, b3a = conv_bn((9, C))          # depthwise 3x3     [(ky*3+kx), c]
    k3b, b3b = conv_bn((9, C))
    k5a, b5a = conv_bn((25, C))         # depthwise 5x5
    k5b, b5b = conv_bn((25, C))
    wf, bf = conv_bn((3, 3, C, C))      # fusion 3x3        [ky, kx, in, out]
    wl, bl = conv_bn((C, C))            # final 1x1
    scales = jnp.array([0.8, 1.0, 1.25], dtype=f32)   # skip_scale_{1,2,3}
    return (scales, w1, b1, k3a, b3a, k3b, b3b,
            k5a, b5a, k5b, b5b, wf, bf, wl, bl)


# ---------------------------------------------------------------------------
# Pure-JAX reference (XLA convs, f32, unfolded scales) for correctness checks.
# ---------------------------------------------------------------------------
def ref_forward(x, params):
    (scales, w1, b1, k3a, b3a, k3b, b3b,
     k5a, b5a, k5b, b5b, wf, bf, wl, bl) = params
    C = x.shape[-1]
    P = jax.lax.Precision.HIGHEST

    def conv(inp, w_hwio, b, groups=1):
        out = jax.lax.conv_general_dilated(
            inp, w_hwio, (1, 1), 'SAME',
            dimension_numbers=('NHWC', 'HWIO', 'NHWC'),
            feature_group_count=groups, precision=P)
        return out + b

    def dw(inp, k_flat, b, ks):
        w = k_flat.reshape(ks, ks, C)[:, :, None, :]   # HWIO, I=1 (depthwise)
        return conv(inp, w, b, groups=C)

    c1 = jnp.einsum('nhwi,io->nhwo', x, w1, precision=P) + b1
    c1 = c1 * (c1 * scales[0])
    t3 = jax.nn.relu(dw(x, k3a, b3a, 3))
    c3 = dw(t3, k3b, b3b, 3)
    c3 = c3 * (c3 * scales[1])
    t5 = jax.nn.relu(dw(x, k5a, b5a, 5))
    c5 = dw(t5, k5b, b5b, 5)
    c5 = c5 * (c5 * scales[2])
    fused = jax.nn.relu(conv(c1 + c3 + c5, wf, bf))
    pre = fused * jax.nn.sigmoid(x) + x
    return jax.nn.relu(jnp.einsum('nhwi,io->nhwo', pre, wl, precision=P) + bl)


if __name__ == "__main__":
    key = jax.random.PRNGKey(0)
    kx, kp = jax.random.split(key)

    # inch == outch == 8 (forced by grouped convs + residual add in the module);
    # W * C = 16 * 8 = 128 so the packed layout is exactly lane-dense.
    N, C, H, W = 2, 8, 16, 16
    x_nchw = jax.random.normal(kx, (N, C, H, W), dtype=jnp.float32)   # PyTorch layout
    x_nhwc = jnp.transpose(x_nchw, (0, 2, 3, 1))                      # kernel layout

    params = make_params(kp, C)

    out = mfaab_forward(x_nhwc, params)
    out = jax.block_until_ready(out)
    assert out.shape == (N, H, W, C)

    ref = ref_forward(x_nhwc, params)
    max_err = float(jnp.max(jnp.abs(out - ref)))
    # Tolerance accounts for bf16 MXU operands (f32 accumulation) through the
    # squared self-gating chains; the f32 reference uses HIGHEST precision.
    if not bool(jnp.allclose(out, ref, rtol=5e-2, atol=3e-2)):
        raise AssertionError(f"Pallas kernel mismatch vs reference, max |err| = {max_err}")

    print("KERNEL_OK")
</pallas_src>

<mosaic_0001>
module attributes {stable_mosaic.version = 11 : i64} {
  func.func @_mfaab_kernel(%arg0: i32, %arg1: memref<1x16x128xf32, #tpu.memory_space<vmem>>, %arg2: memref<128x128xbf16, #tpu.memory_space<vmem>>, %arg3: memref<1x128xf32, #tpu.memory_space<vmem>>, %arg4: memref<384x128xbf16, #tpu.memory_space<vmem>>, %arg5: memref<1x128xf32, #tpu.memory_space<vmem>>, %arg6: memref<384x128xbf16, #tpu.memory_space<vmem>>, %arg7: memref<1x128xf32, #tpu.memory_space<vmem>>, %arg8: memref<640x128xbf16, #tpu.memory_space<vmem>>, %arg9: memref<1x128xf32, #tpu.memory_space<vmem>>, %arg10: memref<640x128xbf16, #tpu.memory_space<vmem>>, %arg11: memref<1x128xf32, #tpu.memory_space<vmem>>, %arg12: memref<384x128xbf16, #tpu.memory_space<vmem>>, %arg13: memref<1x128xf32, #tpu.memory_space<vmem>>, %arg14: memref<128x128xbf16, #tpu.memory_space<vmem>>, %arg15: memref<1x128xf32, #tpu.memory_space<vmem>>, %arg16: memref<1x16x128xf32, #tpu.memory_space<vmem>>) attributes {dimension_semantics = [#tpu.dimension_semantics<parallel>], iteration_bounds = array<i64: 2>, scalar_prefetch = 0 : i64, scratch_operands = 0 : i64, tpu.core_type = #tpu.core_type<tc>, window_params = [{transform_indices = @transform_0, window_bounds = array<i64: 1, 16, 128>}, {pipeline_mode = #tpu.pipeline_mode<synchronous>, transform_indices = @transform_1, window_bounds = array<i64: 128, 128>}, {pipeline_mode = #tpu.pipeline_mode<synchronous>, transform_indices = @transform_2, window_bounds = array<i64: 1, 128>}, {pipeline_mode = #tpu.pipeline_mode<synchronous>, transform_indices = @transform_3, window_bounds = array<i64: 384, 128>}, {pipeline_mode = #tpu.pipeline_mode<synchronous>, transform_indices = @transform_4, window_bounds = array<i64: 1, 128>}, {pipeline_mode = #tpu.pipeline_mode<synchronous>, transform_indices = @transform_5, window_bounds = array<i64: 384, 128>}, {pipeline_mode = #tpu.pipeline_mode<synchronous>, transform_indices = @transform_6, window_bounds = array<i64: 1, 128>}, {pipeline_mode = #tpu.pipeline_mode<synchronous>, transform_indices = @transform_7, window_bounds = array<i64: 640, 128>}, {pipeline_mode = #tpu.pipeline_mode<synchronous>, transform_indices = @transform_8, window_bounds = array<i64: 1, 128>}, {pipeline_mode = #tpu.pipeline_mode<synchronous>, transform_indices = @transform_9, window_bounds = array<i64: 640, 128>}, {pipeline_mode = #tpu.pipeline_mode<synchronous>, transform_indices = @transform_10, window_bounds = array<i64: 1, 128>}, {pipeline_mode = #tpu.pipeline_mode<synchronous>, transform_indices = @transform_11, window_bounds = array<i64: 384, 128>}, {pipeline_mode = #tpu.pipeline_mode<synchronous>, transform_indices = @transform_12, window_bounds = array<i64: 1, 128>}, {pipeline_mode = #tpu.pipeline_mode<synchronous>, transform_indices = @transform_13, window_bounds = array<i64: 128, 128>}, {pipeline_mode = #tpu.pipeline_mode<synchronous>, transform_indices = @transform_14, window_bounds = array<i64: 1, 128>}, {transform_indices = @transform_15, window_bounds = array<i64: 1, 16, 128>}]} {
    %c0 = arith.constant 0 : index
    %c0_0 = arith.constant 0 : index
    %c0_1 = arith.constant 0 : index
    %0 = vector.load %arg1[%c0, %c0_0, %c0_1] : memref<1x16x128xf32, #tpu.memory_space<vmem>>, vector<1x16x128xf32>
    %1 = vector.shape_cast %0 : vector<1x16x128xf32> to vector<16x128xf32>
    %2 = tpu.iota {dimensions = array<i32: 0>} : vector<16x128xi32>
    %c16_i32 = arith.constant 16 : i32
    %c0_i32 = arith.constant 0 : i32
    %3 = arith.cmpi eq, %c16_i32, %c0_i32 : i32
    %c1_i32 = arith.constant 1 : i32
    %4 = arith.select %3, %c1_i32, %c16_i32 : i32
    %5 = vector.broadcast %4 : i32 to vector<16x128xi32>
    %6 = arith.remsi %2, %5 : vector<16x128xi32>
    %c0_i32_2 = arith.constant 0 : i32
    %7 = vector.broadcast %c0_i32_2 : i32 to vector<16x128xi32>
    %8 = arith.cmpi ne, %6, %7 : vector<16x128xi32>
    %c0_i32_3 = arith.constant 0 : i32
    %9 = vector.broadcast %c0_i32_3 : i32 to vector<16x128xi32>
    %10 = arith.cmpi slt, %6, %9 : vector<16x128xi32>
    %c0_i32_4 = arith.constant 0 : i32
    %11 = arith.cmpi slt, %4, %c0_i32_4 : i32
    %12 = vector.broadcast %11 : i1 to vector<16x128xi1>
    %13 = vector.broadcast %12 : vector<16x128xi1> to vector<16x128xi1>
    %14 = arith.xori %10, %13 : vector<16x128xi1>
    %15 = arith.andi %14, %8 : vector<16x128xi1>
    %16 = vector.broadcast %4 : i32 to vector<16x128xi32>
    %17 = arith.addi %6, %16 : vector<16x128xi32>
    %18 = arith.select %15, %17, %6 : vector<16x128xi1>, vector<16x128xi32>
    %c2_i32 = arith.constant 2 : i32
    %19 = vector.broadcast %c2_i32 : i32 to vector<16x128xi32>
    %20 = arith.cmpi sge, %18, %19 : vector<16x128xi32>
    %c18_i32 = arith.constant 18 : i32
    %21 = vector.broadcast %c18_i32 : i32 to vector<16x128xi32>
    %22 = arith.cmpi slt, %18, %21 : vector<16x128xi32>
    %23 = arith.andi %20, %22 : vector<16x128xi1>
    %c1_i32_5 = arith.constant 1 : i32
    %24 = vector.broadcast %c1_i32_5 : i32 to vector<16x128xi32>
    %25 = arith.cmpi sge, %18, %24 : vector<16x128xi32>
    %c17_i32 = arith.constant 17 : i32
    %26 = vector.broadcast %c17_i32 : i32 to vector<16x128xi32>
    %27 = arith.cmpi slt, %18, %26 : vector<16x128xi32>
    %28 = arith.andi %25, %27 : vector<16x128xi1>
    %c-1_i32 = arith.constant -1 : i32
    %29 = vector.broadcast %c-1_i32 : i32 to vector<16x128xi32>
    %30 = arith.cmpi sge, %18, %29 : vector<16x128xi32>
    %c15_i32 = arith.constant 15 : i32
    %31 = vector.broadcast %c15_i32 : i32 to vector<16x128xi32>
    %32 = arith.cmpi slt, %18, %31 : vector<16x128xi32>
    %33 = arith.andi %30, %32 : vector<16x128xi1>
    %c-2_i32 = arith.constant -2 : i32
    %34 = vector.broadcast %c-2_i32 : i32 to vector<16x128xi32>
    %35 = arith.cmpi sge, %18, %34 : vector<16x128xi32>
    %c14_i32 = arith.constant 14 : i32
    %36 = vector.broadcast %c14_i32 : i32 to vector<16x128xi32>
    %37 = arith.cmpi slt, %18, %36 : vector<16x128xi32>
    %38 = arith.andi %35, %37 : vector<16x128xi1>
    %c2_i32_6 = arith.constant 2 : i32
    %39 = tpu.dynamic_rotate %1 by %c2_i32_6 dim 0 : vector<16x128xf32>, i32 -> vector<16x128xf32>
    %cst = arith.constant 0.000000e+00 : f32
    %40 = vector.broadcast %cst : f32 to vector<16x128xf32>
    %41 = arith.select %23, %39, %40 : vector<16x128xi1>, vector<16x128xf32>
    %c1_i32_7 = arith.constant 1 : i32
    %42 = tpu.dynamic_rotate %1 by %c1_i32_7 dim 0 : vector<16x128xf32>, i32 -> vector<16x128xf32>
    %cst_8 = arith.constant 0.000000e+00 : f32
    %43 = vector.broadcast %cst_8 : f32 to vector<16x128xf32>
    %44 = arith.select %28, %42, %43 : vector<16x128xi1>, vector<16x128xf32>
    %c15_i32_9 = arith.constant 15 : i32
    %45 = tpu.dynamic_rotate %1 by %c15_i32_9 dim 0 : vector<16x128xf32>, i32 -> vector<16x128xf32>
    %cst_10 = arith.constant 0.000000e+00 : f32
    %46 = vector.broadcast %cst_10 : f32 to vector<16x128xf32>
    %47 = arith.select %33, %45, %46 : vector<16x128xi1>, vector<16x128xf32>
    %c14_i32_11 = arith.constant 14 : i32
    %48 = tpu.dynamic_rotate %1 by %c14_i32_11 dim 0 : vector<16x128xf32>, i32 -> vector<16x128xf32>
    %cst_12 = arith.constant 0.000000e+00 : f32
    %49 = vector.broadcast %cst_12 : f32 to vector<16x128xf32>
    %50 = arith.select %38, %48, %49 : vector<16x128xi1>, vector<16x128xf32>
    %51 = tpu.concatenate %44, %1, %47 in 1 : vector<16x128xf32>, vector<16x128xf32>, vector<16x128xf32> -> vector<16x384xf32>
    %52 = arith.truncf %51 : vector<16x384xf32> to vector<16x384xbf16>
    %53 = tpu.concatenate %41, %44, %1, %47, %50 in 1 : vector<16x128xf32>, vector<16x128xf32>, vector<16x128xf32>, vector<16x128xf32>, vector<16x128xf32> -> vector<16x640xf32>
    %54 = arith.truncf %53 : vector<16x640xf32> to vector<16x640xbf16>
    %55 = arith.truncf %1 : vector<16x128xf32> to vector<16x128xbf16>
    %c0_13 = arith.constant 0 : index
    %c0_14 = arith.constant 0 : index
    %56 = vector.load %arg2[%c0_13, %c0_14] : memref<128x128xbf16, #tpu.memory_space<vmem>>, vector<128x128xbf16>
    %cst_15 = arith.constant dense<0.000000e+00> : vector<16x128xf32>
    %57 = tpu.matmul %55, %56, %cst_15 {dimension_numbers = #tpu.dot_dimension_numbers<[1], [0], [0], [1], [0, 0, 1, 1], [], []>} : vector<16x128xbf16>, vector<128x128xbf16>, vector<16x128xf32> -> vector<16x128xf32>
    %c0_16 = arith.constant 0 : index
    %c0_17 = arith.constant 0 : index
    %58 = vector.load %arg3[%c0_16, %c0_17] : memref<1x128xf32, #tpu.memory_space<vmem>>, vector<1x128xf32>
    %59 = vector.broadcast %58 : vector<1x128xf32> to vector<16x128xf32>
    %60 = arith.addf %57, %59 : vector<16x128xf32>
    %61 = arith.mulf %60, %60 : vector<16x128xf32>
    %c0_18 = arith.constant 0 : index
    %c0_19 = arith.constant 0 : index
    %62 = vector.load %arg4[%c0_18, %c0_19] : memref<384x128xbf16, #tpu.memory_space<vmem>>, vector<384x128xbf16>
    %cst_20 = arith.constant dense<0.000000e+00> : vector<16x128xf32>
    %63 = tpu.matmul %52, %62, %cst_20 {dimension_numbers = #tpu.dot_dimension_numbers<[1], [0], [0], [1], [0, 0, 1, 1], [], []>} : vector<16x384xbf16>, vector<384x128xbf16>, vector<16x128xf32> -> vector<16x128xf32>
    %c0_21 = arith.constant 0 : index
    %c0_22 = arith.constant 0 : index
    %64 = vector.load %arg5[%c0_21, %c0_22] : memref<1x128xf32, #tpu.memory_space<vmem>>, vector<1x128xf32>
    %65 = vector.broadcast %64 : vector<1x128xf32> to vector<16x128xf32>
    %66 = arith.addf %63, %65 : vector<16x128xf32>
    %cst_23 = arith.constant 0.000000e+00 : f32
    %67 = vector.broadcast %cst_23 : f32 to vector<16x128xf32>
    %68 = arith.maximumf %66, %67 : vector<16x128xf32>
    %c1_i32_24 = arith.constant 1 : i32
    %69 = tpu.dynamic_rotate %68 by %c1_i32_24 dim 0 : vector<16x128xf32>, i32 -> vector<16x128xf32>
    %cst_25 = arith.constant 0.000000e+00 : f32
    %70 = vector.broadcast %cst_25 : f32 to vector<16x128xf32>
    %71 = arith.select %28, %69, %70 : vector<16x128xi1>, vector<16x128xf32>
    %c15_i32_26 = arith.constant 15 : i32
    %72 = tpu.dynamic_rotate %68 by %c15_i32_26 dim 0 : vector<16x128xf32>, i32 -> vector<16x128xf32>
    %cst_27 = arith.constant 0.000000e+00 : f32
    %73 = vector.broadcast %cst_27 : f32 to vector<16x128xf32>
    %74 = arith.select %33, %72, %73 : vector<16x128xi1>, vector<16x128xf32>
    %75 = tpu.concatenate %71, %68, %74 in 1 : vector<16x128xf32>, vector<16x128xf32>, vector<16x128xf32> -> vector<16x384xf32>
    %76 = arith.truncf %75 : vector<16x384xf32> to vector<16x384xbf16>
    %c0_28 = arith.constant 0 : index
    %c0_29 = arith.constant 0 : index
    %77 = vector.load %arg6[%c0_28, %c0_29] : memref<384x128xbf16, #tpu.memory_space<vmem>>, vector<384x128xbf16>
    %cst_30 = arith.constant dense<0.000000e+00> : vector<16x128xf32>
    %78 = tpu.matmul %76, %77, %cst_30 {dimension_numbers = #tpu.dot_dimension_numbers<[1], [0], [0], [1], [0, 0, 1, 1], [], []>} : vector<16x384xbf16>, vector<384x128xbf16>, vector<16x128xf32> -> vector<16x128xf32>
    %c0_31 = arith.constant 0 : index
    %c0_32 = arith.constant 0 : index
    %79 = vector.load %arg7[%c0_31, %c0_32] : memref<1x128xf32, #tpu.memory_space<vmem>>, vector<1x128xf32>
    %80 = vector.broadcast %79 : vector<1x128xf32> to vector<16x128xf32>
    %81 = arith.addf %78, %80 : vector<16x128xf32>
    %82 = arith.mulf %81, %81 : vector<16x128xf32>
    %c0_33 = arith.constant 0 : index
    %c0_34 = arith.constant 0 : index
    %83 = vector.load %arg8[%c0_33, %c0_34] : memref<640x128xbf16, #tpu.memory_space<vmem>>, vector<640x128xbf16>
    %cst_35 = arith.constant dense<0.000000e+00> : vector<16x128xf32>
    %84 = tpu.matmul %54, %83, %cst_35 {dimension_numbers = #tpu.dot_dimension_numbers<[1], [0], [0], [1], [0, 0, 1, 1], [], []>} : vector<16x640xbf16>, vector<640x128xbf16>, vector<16x128xf32> -> vector<16x128xf32>
    %c0_36 = arith.constant 0 : index
    %c0_37 = arith.constant 0 : index
    %85 = vector.load %arg9[%c0_36, %c0_37] : memref<1x128xf32, #tpu.memory_space<vmem>>, vector<1x128xf32>
    %86 = vector.broadcast %85 : vector<1x128xf32> to vector<16x128xf32>
    %87 = arith.addf %84, %86 : vector<16x128xf32>
    %cst_38 = arith.constant 0.000000e+00 : f32
    %88 = vector.broadcast %cst_38 : f32 to vector<16x128xf32>
    %89 = arith.maximumf %87, %88 : vector<16x128xf32>
    %c2_i32_39 = arith.constant 2 : i32
    %90 = tpu.dynamic_rotate %89 by %c2_i32_39 dim 0 : vector<16x128xf32>, i32 -> vector<16x128xf32>
    %cst_40 = arith.constant 0.000000e+00 : f32
    %91 = vector.broadcast %cst_40 : f32 to vector<16x128xf32>
    %92 = arith.select %23, %90, %91 : vector<16x128xi1>, vector<16x128xf32>
    %c1_i32_41 = arith.constant 1 : i32
    %93 = tpu.dynamic_rotate %89 by %c1_i32_41 dim 0 : vector<16x128xf32>, i32 -> vector<16x128xf32>
    %cst_42 = arith.constant 0.000000e+00 : f32
    %94 = vector.broadcast %cst_42 : f32 to vector<16x128xf32>
    %95 = arith.select %28, %93, %94 : vector<16x128xi1>, vector<16x128xf32>
    %c15_i32_43 = arith.constant 15 : i32
    %96 = tpu.dynamic_rotate %89 by %c15_i32_43 dim 0 : vector<16x128xf32>, i32 -> vector<16x128xf32>
    %cst_44 = arith.constant 0.000000e+00 : f32
    %97 = vector.broadcast %cst_44 : f32 to vector<16x128xf32>
    %98 = arith.select %33, %96, %97 : vector<16x128xi1>, vector<16x128xf32>
    %c14_i32_45 = arith.constant 14 : i32
    %99 = tpu.dynamic_rotate %89 by %c14_i32_45 dim 0 : vector<16x128xf32>, i32 -> vector<16x128xf32>
    %cst_46 = arith.constant 0.000000e+00 : f32
    %100 = vector.broadcast %cst_46 : f32 to vector<16x128xf32>
    %101 = arith.select %38, %99, %100 : vector<16x128xi1>, vector<16x128xf32>
    %102 = tpu.concatenate %92, %95, %89, %98, %101 in 1 : vector<16x128xf32>, vector<16x128xf32>, vector<16x128xf32>, vector<16x128xf32>, vector<16x128xf32> -> vector<16x640xf32>
    %103 = arith.truncf %102 : vector<16x640xf32> to vector<16x640xbf16>
    %c0_47 = arith.constant 0 : index
    %c0_48 = arith.constant 0 : index
    %104 = vector.load %arg10[%c0_47, %c0_48] : memref<640x128xbf16, #tpu.memory_space<vmem>>, vector<640x128xbf16>
    %cst_49 = arith.constant dense<0.000000e+00> : vector<16x128xf32>
    %105 = tpu.matmul %103, %104, %cst_49 {dimension_numbers = #tpu.dot_dimension_numbers<[1], [0], [0], [1], [0, 0, 1, 1], [], []>} : vector<16x640xbf16>, vector<640x128xbf16>, vector<16x128xf32> -> vector<16x128xf32>
    %c0_50 = arith.constant 0 : index
    %c0_51 = arith.constant 0 : index
    %106 = vector.load %arg11[%c0_50, %c0_51] : memref<1x128xf32, #tpu.memory_space<vmem>>, vector<1x128xf32>
    %107 = vector.broadcast %106 : vector<1x128xf32> to vector<16x128xf32>
    %108 = arith.addf %105, %107 : vector<16x128xf32>
    %109 = arith.mulf %108, %108 : vector<16x128xf32>
    %110 = arith.addf %61, %82 : vector<16x128xf32>
    %111 = arith.addf %110, %109 : vector<16x128xf32>
    %c1_i32_52 = arith.constant 1 : i32
    %112 = tpu.dynamic_rotate %111 by %c1_i32_52 dim 0 : vector<16x128xf32>, i32 -> vector<16x128xf32>
    %cst_53 = arith.constant 0.000000e+00 : f32
    %113 = vector.broadcast %cst_53 : f32 to vector<16x128xf32>
    %114 = arith.select %28, %112, %113 : vector<16x128xi1>, vector<16x128xf32>
    %c15_i32_54 = arith.constant 15 : i32
    %115 = tpu.dynamic_rotate %111 by %c15_i32_54 dim 0 : vector<16x128xf32>, i32 -> vector<16x128xf32>
    %cst_55 = arith.constant 0.000000e+00 : f32
    %116 = vector.broadcast %cst_55 : f32 to vector<16x128xf32>
    %117 = arith.select %33, %115, %116 : vector<16x128xi1>, vector<16x128xf32>
    %118 = tpu.concatenate %114, %111, %117 in 1 : vector<16x128xf32>, vector<16x128xf32>, vector<16x128xf32> -> vector<16x384xf32>
    %119 = arith.truncf %118 : vector<16x384xf32> to vector<16x384xbf16>
    %c0_56 = arith.constant 0 : index
    %c0_57 = arith.constant 0 : index
    %120 = vector.load %arg12[%c0_56, %c0_57] : memref<384x128xbf16, #tpu.memory_space<vmem>>, vector<384x128xbf16>
    %cst_58 = arith.constant dense<0.000000e+00> : vector<16x128xf32>
    %121 = tpu.matmul %119, %120, %cst_58 {dimension_numbers = #tpu.dot_dimension_numbers<[1], [0], [0], [1], [0, 0, 1, 1], [], []>} : vector<16x384xbf16>, vector<384x128xbf16>, vector<16x128xf32> -> vector<16x128xf32>
    %c0_59 = arith.constant 0 : index
    %c0_60 = arith.constant 0 : index
    %122 = vector.load %arg13[%c0_59, %c0_60] : memref<1x128xf32, #tpu.memory_space<vmem>>, vector<1x128xf32>
    %123 = vector.broadcast %122 : vector<1x128xf32> to vector<16x128xf32>
    %124 = arith.addf %121, %123 : vector<16x128xf32>
    %cst_61 = arith.constant 0.000000e+00 : f32
    %125 = vector.broadcast %cst_61 : f32 to vector<16x128xf32>
    %126 = arith.maximumf %124, %125 : vector<16x128xf32>
    %cst_62 = arith.constant 0.000000e+00 : f32
    %127 = vector.broadcast %cst_62 : f32 to vector<16x128xf32>
    %128 = arith.subf %127, %1 : vector<16x128xf32>
    %129 = math.exp %128 : vector<16x128xf32>
    %cst_63 = arith.constant 1.000000e+00 : f32
    %130 = vector.broadcast %cst_63 : f32 to vector<16x128xf32>
    %131 = arith.addf %130, %129 : vector<16x128xf32>
    %cst_64 = arith.constant 1.000000e+00 : f32
    %132 = vector.broadcast %cst_64 : f32 to vector<16x128xf32>
    %133 = arith.divf %132, %131 : vector<16x128xf32>
    %134 = arith.mulf %126, %133 : vector<16x128xf32>
    %135 = arith.addf %134, %1 : vector<16x128xf32>
    %136 = arith.truncf %135 : vector<16x128xf32> to vector<16x128xbf16>
    %c0_65 = arith.constant 0 : index
    %c0_66 = arith.constant 0 : index
    %137 = vector.load %arg14[%c0_65, %c0_66] : memref<128x128xbf16, #tpu.memory_space<vmem>>, vector<128x128xbf16>
    %cst_67 = arith.constant dense<0.000000e+00> : vector<16x128xf32>
    %138 = tpu.matmul %136, %137, %cst_67 {dimension_numbers = #tpu.dot_dimension_numbers<[1], [0], [0], [1], [0, 0, 1, 1], [], []>} : vector<16x128xbf16>, vector<128x128xbf16>, vector<16x128xf32> -> vector<16x128xf32>
    %c0_68 = arith.constant 0 : index
    %c0_69 = arith.constant 0 : index
    %139 = vector.load %arg15[%c0_68, %c0_69] : memref<1x128xf32, #tpu.memory_space<vmem>>, vector<1x128xf32>
    %140 = vector.broadcast %139 : vector<1x128xf32> to vector<16x128xf32>
    %141 = arith.addf %138, %140 : vector<16x128xf32>
    %cst_70 = arith.constant 0.000000e+00 : f32
    %142 = vector.broadcast %cst_70 : f32 to vector<16x128xf32>
    %143 = arith.maximumf %141, %142 : vector<16x128xf32>
    %c0_71 = arith.constant 0 : index
    %c0_72 = arith.constant 0 : index
    %c0_73 = arith.constant 0 : index
    %144 = vector.load %arg16[%c0_71, %c0_72, %c0_73] : memref<1x16x128xf32, #tpu.memory_space<vmem>>, vector<1x16x128xf32>
    %145 = vector.shape_cast %144 : vector<1x16x128xf32> to vector<16x128xf32>
    %146 = vector.shape_cast %143 : vector<16x128xf32> to vector<1x16x128xf32>
    tpu.vector_store %arg16[%c0_71, %c0_72, %c0_73], %146 {strides = array<i32>} : memref<1x16x128xf32, #tpu.memory_space<vmem>>, vector<1x16x128xf32>,
    return
  }
  func.func @transform_0(%arg0: i32) -> (i32, i32, i32) {
    %c0_i32 = arith.constant 0 : i32
    %c0_i32_0 = arith.constant 0 : i32
    %c0_i32_1 = arith.constant 0 : i32
    return %arg0, %c0_i32, %c0_i32_0 : i32, i32, i32
  }
  func.func @transform_1(%arg0: i32) -> (i32, i32) {
    %c0_i32 = arith.constant 0 : i32
    %c0_i32_0 = arith.constant 0 : i32
    %c0_i32_1 = arith.constant 0 : i32
    return %c0_i32, %c0_i32_0 : i32, i32
  }
  func.func @transform_2(%arg0: i32) -> (i32, i32) {
    %c0_i32 = arith.constant 0 : i32
    %c0_i32_0 = arith.constant 0 : i32
    %c0_i32_1 = arith.constant 0 : i32
    return %c0_i32, %c0_i32_0 : i32, i32
  }
  func.func @transform_3(%arg0: i32) -> (i32, i32) {
    %c0_i32 = arith.constant 0 : i32
    %c0_i32_0 = arith.constant 0 : i32
    %c0_i32_1 = arith.constant 0 : i32
    return %c0_i32, %c0_i32_0 : i32, i32
  }
  func.func @transform_4(%arg0: i32) -> (i32, i32) {
    %c0_i32 = arith.constant 0 : i32
    %c0_i32_0 = arith.constant 0 : i32
    %c0_i32_1 = arith.constant 0 : i32
    return %c0_i32, %c0_i32_0 : i32, i32
  }
  func.func @transform_5(%arg0: i32) -> (i32, i32) {
    %c0_i32 = arith.constant 0 : i32
    %c0_i32_0 = arith.constant 0 : i32
    %c0_i32_1 = arith.constant 0 : i32
    return %c0_i32, %c0_i32_0 : i32, i32
  }
  func.func @transform_6(%arg0: i32) -> (i32, i32) {
    %c0_i32 = arith.constant 0 : i32
    %c0_i32_0 = arith.constant 0 : i32
    %c0_i32_1 = arith.constant 0 : i32
    return %c0_i32, %c0_i32_0 : i32, i32
  }
  func.func @transform_7(%arg0: i32) -> (i32, i32) {
    %c0_i32 = arith.constant 0 : i32
    %c0_i32_0 = arith.constant 0 : i32
    %c0_i32_1 = arith.constant 0 : i32
    return %c0_i32, %c0_i32_0 : i32, i32
  }
  func.func @transform_8(%arg0: i32) -> (i32, i32) {
    %c0_i32 = arith.constant 0 : i32
    %c0_i32_0 = arith.constant 0 : i32
    %c0_i32_1 = arith.constant 0 : i32
    return %c0_i32, %c0_i32_0 : i32, i32
  }
  func.func @transform_9(%arg0: i32) -> (i32, i32) {
    %c0_i32 = arith.constant 0 : i32
    %c0_i32_0 = arith.constant 0 : i32
    %c0_i32_1 = arith.constant 0 : i32
    return %c0_i32, %c0_i32_0 : i32, i32
  }
  func.func @transform_10(%arg0: i32) -> (i32, i32) {
    %c0_i32 = arith.constant 0 : i32
    %c0_i32_0 = arith.constant 0 : i32
    %c0_i32_1 = arith.constant 0 : i32
    return %c0_i32, %c0_i32_0 : i32, i32
  }
  func.func @transform_11(%arg0: i32) -> (i32, i32) {
    %c0_i32 = arith.constant 0 : i32
    %c0_i32_0 = arith.constant 0 : i32
    %c0_i32_1 = arith.constant 0 : i32
    return %c0_i32, %c0_i32_0 : i32, i32
  }
  func.func @transform_12(%arg0: i32) -> (i32, i32) {
    %c0_i32 = arith.constant 0 : i32
    %c0_i32_0 = arith.constant 0 : i32
    %c0_i32_1 = arith.constant 0 : i32
    return %c0_i32, %c0_i32_0 : i32, i32
  }
  func.func @transform_13(%arg0: i32) -> (i32, i32) {
    %c0_i32 = arith.constant 0 : i32
    %c0_i32_0 = arith.constant 0 : i32
    %c0_i32_1 = arith.constant 0 : i32
    return %c0_i32, %c0_i32_0 : i32, i32
  }
  func.func @transform_14(%arg0: i32) -> (i32, i32) {
    %c0_i32 = arith.constant 0 : i32
    %c0_i32_0 = arith.constant 0 : i32
    %c0_i32_1 = arith.constant 0 : i32
    return %c0_i32, %c0_i32_0 : i32, i32
  }
  func.func @transform_15(%arg0: i32) -> (i32, i32, i32) {
    %c0_i32 = arith.constant 0 : i32
    %c0_i32_0 = arith.constant 0 : i32
    %c0_i32_1 = arith.constant 0 : i32
    return %arg0, %c0_i32, %c0_i32_0 : i32, i32, i32
  }
}

</mosaic_0001>

<llo_original>
// kernel: tpu_custom_call.1
$region0: #{tpu_custom_call.1}
  #allocation0 [shape = 'u32[]', space=smem, size = 0x4, offset = 0x4, fixed_abs, tag = 'smem constant byte address 0x4 - core index']
  #allocation1 [shape = 'u32[72,128]{1,0:T(1,128)}', space=vmem, size = 0x9000, scoped, tag = 'internal scratch']
  %s0 = inlined_call_operand.hbm [shape: f32[2,16,128], index: 0, kind: input, shape index: {}]
  %s1 = inlined_call_operand.hbm [shape: bf16[128,128], index: 1, kind: input, shape index: {}]
  %s2 = inlined_call_operand.vmem [shape: f32[1,128], index: 2, kind: input, shape index: {}]
  %s3 = inlined_call_operand.hbm [shape: bf16[384,128], index: 3, kind: input, shape index: {}]
  %s4 = inlined_call_operand.vmem [shape: f32[1,128], index: 4, kind: input, shape index: {}]
  %s5 = inlined_call_operand.hbm [shape: bf16[384,128], index: 5, kind: input, shape index: {}]
  %s6 = inlined_call_operand.vmem [shape: f32[1,128], index: 6, kind: input, shape index: {}]
  %s7 = inlined_call_operand.hbm [shape: bf16[640,128], index: 7, kind: input, shape index: {}]
  %s8 = inlined_call_operand.vmem [shape: f32[1,128], index: 8, kind: input, shape index: {}]
  %s9 = inlined_call_operand.hbm [shape: bf16[640,128], index: 9, kind: input, shape index: {}]
  %s10 = inlined_call_operand.vmem [shape: f32[1,128], index: 10, kind: input, shape index: {}]
  %s11 = inlined_call_operand.hbm [shape: bf16[384,128], index: 11, kind: input, shape index: {}]
  %s12 = inlined_call_operand.vmem [shape: f32[1,128], index: 12, kind: input, shape index: {}]
  %s13 = inlined_call_operand.hbm [shape: bf16[128,128], index: 13, kind: input, shape index: {}]
  %s14 = inlined_call_operand.vmem [shape: f32[1,128], index: 14, kind: input, shape index: {}]
  %s15 = inlined_call_operand.hbm [shape: f32[2,16,128], index: 15, kind: output, shape index: {}]
  %s16 = sld [smem:[#allocation0]]
  $region125: #{tpu_custom_call.1} parent=0
    _
  %s18 = ssub.s32 1, %s16
  %s19 = scalar_select 0, %s18, %s16
  $region1: #{tpu_custom_call.1} parent=0
    #allocation2 [shape = 'u8[16384]{0}', space=vmem, size = 0x4000, scoped, tag = 'input window, operand 0']
    #allocation3 [shape = 's32[2]{0}', space=sflag, size = 0x8, scoped, tag = 'scoped memory for tpu_custom_call.1']
    #allocation4 [shape = 's32[2]{0}', space=sflag, size = 0x8, scoped, tag = 'scoped memory for tpu_custom_call.1']
    #allocation5 [shape = 'u8[32768]{0}', space=vmem, size = 0x8000, scoped, tag = 'input window, operand 1, single buffered']
    #allocation6 [shape = 's32[1]{0}', space=sflag, size = 0x4, scoped, tag = 'scoped memory for tpu_custom_call.1']
    #allocation7 [shape = 'u8[98304]{0}', space=vmem, size = 0x18000, scoped, tag = 'input window, operand 3, single buffered']
    #allocation8 [shape = 'u8[98304]{0}', space=vmem, size = 0x18000, scoped, tag = 'input window, operand 5, single buffered']
    #allocation9 [shape = 's32[1]{0}', space=sflag, size = 0x4, scoped, tag = 'scoped memory for tpu_custom_call.1']
    #allocation10 [shape = 'u8[163840]{0}', space=vmem, size = 0x28000, scoped, tag = 'input window, operand 7, single buffered']
    #allocation11 [shape = 'u8[163840]{0}', space=vmem, size = 0x28000, scoped, tag = 'input window, operand 9, single buffered']
    #allocation12 [shape = 's32[1]{0}', space=sflag, size = 0x4, scoped, tag = 'scoped memory for tpu_custom_call.1']
    #allocation13 [shape = 'u8[98304]{0}', space=vmem, size = 0x18000, scoped, tag = 'input window, operand 11, single buffered']
    #allocation14 [shape = 'u8[32768]{0}', space=vmem, size = 0x8000, scoped, tag = 'input window, operand 13, single buffered']
    #allocation15 [shape = 's32[1]{0}', space=sflag, size = 0x4, scoped, tag = 'scoped memory for tpu_custom_call.1']
    #allocation16 [shape = 'u8[16384]{0}', space=vmem, size = 0x4000, scoped, tag = 'output window, operand 0']
    %20 = vsyncpa [#allocation3], 0
    %s21 = scalar_lea.sflag [#allocation3], 1
    %22 = vsyncpa %s21, 0
    %23 = vsyncpa [#allocation6], 0
    %24 = vsyncpa [#allocation9], 0
    %25 = vsyncpa [#allocation12], 0
    %26 = vsyncpa [#allocation15], 0
    %27 = vsyncpa [#allocation4], 0
    %s28 = scalar_lea.sflag [#allocation4], 1
    %29 = vsyncpa %s28, 0
    loop: start=0, step=1, limit=4
    $region2: #{tpu_custom_call.1} parent=1 // loop_pre_header
      _
    $region3: #{tpu_custom_call.1} parent=1 // loop_header
      %s31 = sphi 0, %s35
      %p32 = scmp.ge.s32.totalorder %s31, 4
      %s41 = sphi 0, %s43
      %s44 = sphi 0, %s41
      %s45 = sphi 0, %s44
      %s61 = sphi 0, %s45
      %s65 = sphi 0, %s65
      %s67 = sphi 0, %s65
      %s68 = sphi 0, %s67
      %s82 = sphi 0, %s68
      %s86 = sphi 0, %s86
      %s88 = sphi 0, %s86
      %s89 = sphi 0, %s88
      %s103 = sphi 0, %s89
      %s107 = sphi 0, %s107
      %s109 = sphi 0, %s107
      %s110 = sphi 0, %s109
      %s124 = sphi 0, %s110
      %s128 = sphi 0, %s128
      %s130 = sphi 0, %s128
      %s131 = sphi 0, %s130
      %s145 = sphi 0, %s131
      %s149 = sphi 0, %s149
      %s151 = sphi 0, %s149
      %s152 = sphi 0, %s151
      %s166 = sphi 0, %s152
      %s170 = sphi 0, %s170
      %s172 = sphi 0, %s170
      %s173 = sphi 0, %s172
      %s187 = sphi 0, %s173
      %s191 = sphi 0, %s191
      %s193 = sphi 0, %s191
      %s194 = sphi 0, %s193
      %s208 = sphi 0, %s194
      %s212 = sphi 0, %s212
      %s214 = sphi 0, %s212
      %s215 = sphi 0, %s214
      %s229 = sphi 0, %s215
      %s233 = sphi 0, %s233
      %s235 = sphi 0, %s233
      %s236 = sphi 0, %s235
      %s250 = sphi 0, %s236
      %s254 = sphi 0, %s254
      %s256 = sphi 0, %s254
      %s257 = sphi 0, %s256
      %s271 = sphi 0, %s257
      %s275 = sphi 0, %s275
      %s277 = sphi 0, %s275
      %s278 = sphi 0, %s277
      %s292 = sphi 0, %s278
      %s296 = sphi 0, %s296
      %s298 = sphi 0, %s296
      %s299 = sphi 0, %s298
      %s313 = sphi 0, %s299
      %s317 = sphi 0, %s317
      %s319 = sphi 0, %s317
      %s320 = sphi 0, %s319
      %s334 = sphi 0, %s320
      %s338 = sphi 0, %s338
      %s340 = sphi 0, %s338
      %s341 = sphi 0, %s340
      %s355 = sphi 0, %s341
      %s361 = sphi 0, %s363
      %s364 = sphi 0, %s361
      %s365 = sphi 0, %s364
      %s381 = sphi 0, %s365
    $region4: #{tpu_custom_call.1} parent=1 // loop_header_branch
      %34 = sbr.rel (%p32) target = $region8
    $region5: #{tpu_custom_call.1} parent=1 // loop_body
      %s36 = ssub.s32 %s31, 1
      %s37 = ssub.s32 %s31, 2
      %s38 = sadd.s32 %s31, 1
      %s39 = ssub.s32 %s31, %s38
      %p40 = scmp.eq.s32.totalorder %s39, 0
      %s42 = sadd.s32 %s41, 1
      %s43 = scalar_select %p40, %s41, %s42
      %p46 = pneg %p40
      %p47 = scmp.eq.s32.totalorder %s31, 1
      %p48 = por %p46, %p47
      %p49 = scmp.ne.s32.totalorder %s41, %s44
      %p50 = scmp.eq.s32.totalorder %s31, 0
      %p51 = por %p49, %p50
      %p52 = scmp.ne.s32.totalorder %s41, %s44
      %p53 = scmp.eq.s32.totalorder %s36, 1
      %p54 = por %p52, %p53
      %p55 = scmp.ne.s32.totalorder %s44, %s45
      %p56 = scmp.eq.s32.totalorder %s36, 0
      %p57 = por %p55, %p56
      %p58 = scmp.ne.s32.totalorder %s44, %s45
      %p59 = scmp.eq.s32.totalorder %s37, 1
      %p60 = por %p58, %p59
      %p62 = scmp.ne.s32.totalorder %s45, %s61
      %p63 = scmp.eq.s32.totalorder %s37, 0
      %p64 = por %p62, %p63
      %s66 = sadd.s32 %s65, 1
      %p69 = scmp.eq.s32.totalorder %s31, 1
      %p70 = scmp.ne.s32.totalorder %s65, %s67
      %p71 = scmp.eq.s32.totalorder %s31, 0
      %p72 = por %p70, %p71
      %p73 = scmp.ne.s32.totalorder %s65, %s67
      %p74 = scmp.eq.s32.totalorder %s36, 1
      %p75 = por %p73, %p74
      %p76 = scmp.ne.s32.totalorder %s67, %s68
      %p77 = scmp.eq.s32.totalorder %s36, 0
      %p78 = por %p76, %p77
      %p79 = scmp.ne.s32.totalorder %s67, %s68
      %p80 = scmp.eq.s32.totalorder %s37, 1
      %p81 = por %p79, %p80
      %p83 = scmp.ne.s32.totalorder %s68, %s82
      %p84 = scmp.eq.s32.totalorder %s37, 0
      %p85 = por %p83, %p84
      %s87 = sadd.s32 %s86, 1
      %p90 = scmp.eq.s32.totalorder %s31, 1
      %p91 = scmp.ne.s32.totalorder %s86, %s88
      %p92 = scmp.eq.s32.totalorder %s31, 0
      %p93 = por %p91, %p92
      %p94 = scmp.ne.s32.totalorder %s86, %s88
      %p95 = scmp.eq.s32.totalorder %s36, 1
      %p96 = por %p94, %p95
      %p97 = scmp.ne.s32.totalorder %s88, %s89
      %p98 = scmp.eq.s32.totalorder %s36, 0
      %p99 = por %p97, %p98
      %p100 = scmp.ne.s32.totalorder %s88, %s89
      %p101 = scmp.eq.s32.totalorder %s37, 1
      %p102 = por %p100, %p101
      %p104 = scmp.ne.s32.totalorder %s89, %s103
      %p105 = scmp.eq.s32.totalorder %s37, 0
      %p106 = por %p104, %p105
      %s108 = sadd.s32 %s107, 1
      %p111 = scmp.eq.s32.totalorder %s31, 1
      %p112 = scmp.ne.s32.totalorder %s107, %s109
      %p113 = scmp.eq.s32.totalorder %s31, 0
      %p114 = por %p112, %p113
      %p115 = scmp.ne.s32.totalorder %s107, %s109
      %p116 = scmp.eq.s32.totalorder %s36, 1
      %p117 = por %p115, %p116
      %p118 = scmp.ne.s32.totalorder %s109, %s110
      %p119 = scmp.eq.s32.totalorder %s36, 0
      %p120 = por %p118, %p119
      %p121 = scmp.ne.s32.totalorder %s109, %s110
      %p122 = scmp.eq.s32.totalorder %s37, 1
      %p123 = por %p121, %p122
      %p125 = scmp.ne.s32.totalorder %s110, %s124
      %p126 = scmp.eq.s32.totalorder %s37, 0
      %p127 = por %p125, %p126
      %s129 = sadd.s32 %s128, 1
      %p132 = scmp.eq.s32.totalorder %s31, 1
      %p133 = scmp.ne.s32.totalorder %s128, %s130
      %p134 = scmp.eq.s32.totalorder %s31, 0
      %p135 = por %p133, %p134
      %p136 = scmp.ne.s32.totalorder %s128, %s130
      %p137 = scmp.eq.s32.totalorder %s36, 1
      %p138 = por %p136, %p137
      %p139 = scmp.ne.s32.totalorder %s130, %s131
      %p140 = scmp.eq.s32.totalorder %s36, 0
      %p141 = por %p139, %p140
      %p142 = scmp.ne.s32.totalorder %s130, %s131
      %p143 = scmp.eq.s32.totalorder %s37, 1
      %p144 = por %p142, %p143
      %p146 = scmp.ne.s32.totalorder %s131, %s145
      %p147 = scmp.eq.s32.totalorder %s37, 0
      %p148 = por %p146, %p147
      %s150 = sadd.s32 %s149, 1
      %p153 = scmp.eq.s32.totalorder %s31, 1
      %p154 = scmp.ne.s32.totalorder %s149, %s151
      %p155 = scmp.eq.s32.totalorder %s31, 0
      %p156 = por %p154, %p155
      %p157 = scmp.ne.s32.totalorder %s149, %s151
      %p158 = scmp.eq.s32.totalorder %s36, 1
      %p159 = por %p157, %p158
      %p160 = scmp.ne.s32.totalorder %s151, %s152
      %p161 = scmp.eq.s32.totalorder %s36, 0
      %p162 = por %p160, %p161
      %p163 = scmp.ne.s32.totalorder %s151, %s152
      %p164 = scmp.eq.s32.totalorder %s37, 1
      %p165 = por %p163, %p164
      %p167 = scmp.ne.s32.totalorder %s152, %s166
      %p168 = scmp.eq.s32.totalorder %s37, 0
      %p169 = por %p167, %p168
      %s171 = sadd.s32 %s170, 1
      %p174 = scmp.eq.s32.totalorder %s31, 1
      %p175 = scmp.ne.s32.totalorder %s170, %s172
      %p176 = scmp.eq.s32.totalorder %s31, 0
      %p177 = por %p175, %p176
      %p178 = scmp.ne.s32.totalorder %s170, %s172
      %p179 = scmp.eq.s32.totalorder %s36, 1
      %p180 = por %p178, %p179
      %p181 = scmp.ne.s32.totalorder %s172, %s173
      %p182 = scmp.eq.s32.totalorder %s36, 0
      %p183 = por %p181, %p182
      %p184 = scmp.ne.s32.totalorder %s172, %s173
      %p185 = scmp.eq.s32.totalorder %s37, 1
      %p186 = por %p184, %p185
      %p188 = scmp.ne.s32.totalorder %s173, %s187
      %p189 = scmp.eq.s32.totalorder %s37, 0
      %p190 = por %p188, %p189
      %s192 = sadd.s32 %s191, 1
      %p195 = scmp.eq.s32.totalorder %s31, 1
      %p196 = scmp.ne.s32.totalorder %s191, %s193
      %p197 = scmp.eq.s32.totalorder %s31, 0
      %p198 = por %p196, %p197
      %p199 = scmp.ne.s32.totalorder %s191, %s193
      %p200 = scmp.eq.s32.totalorder %s36, 1
      %p201 = por %p199, %p200
      %p202 = scmp.ne.s32.totalorder %s193, %s194
      %p203 = scmp.eq.s32.totalorder %s36, 0
      %p204 = por %p202, %p203
      %p205 = scmp.ne.s32.totalorder %s193, %s194
      %p206 = scmp.eq.s32.totalorder %s37, 1
      %p207 = por %p205, %p206
      %p209 = scmp.ne.s32.totalorder %s194, %s208
      %p210 = scmp.eq.s32.totalorder %s37, 0
      %p211 = por %p209, %p210
      %s213 = sadd.s32 %s212, 1
      %p216 = scmp.eq.s32.totalorder %s31, 1
      %p217 = scmp.ne.s32.totalorder %s212, %s214
      %p218 = scmp.eq.s32.totalorder %s31, 0
      %p219 = por %p217, %p218
      %p220 = scmp.ne.s32.totalorder %s212, %s214
      %p221 = scmp.eq.s32.totalorder %s36, 1
      %p222 = por %p220, %p221
      %p223 = scmp.ne.s32.totalorder %s214, %s215
      %p224 = scmp.eq.s32.totalorder %s36, 0
      %p225 = por %p223, %p224
      %p226 = scmp.ne.s32.totalorder %s214, %s215
      %p227 = scmp.eq.s32.totalorder %s37, 1
      %p228 = por %p226, %p227
      %p230 = scmp.ne.s32.totalorder %s215, %s229
      %p231 = scmp.eq.s32.totalorder %s37, 0
      %p232 = por %p230, %p231
      %s234 = sadd.s32 %s233, 1
      %p237 = scmp.eq.s32.totalorder %s31, 1
      %p238 = scmp.ne.s32.totalorder %s233, %s235
      %p239 = scmp.eq.s32.totalorder %s31, 0
      %p240 = por %p238, %p239
      %p241 = scmp.ne.s32.totalorder %s233, %s235
      %p242 = scmp.eq.s32.totalorder %s36, 1
      %p243 = por %p241, %p242
      %p244 = scmp.ne.s32.totalorder %s235, %s236
      %p245 = scmp.eq.s32.totalorder %s36, 0
      %p246 = por %p244, %p245
      %p247 = scmp.ne.s32.totalorder %s235, %s236
      %p248 = scmp.eq.s32.totalorder %s37, 1
      %p249 = por %p247, %p248
      %p251 = scmp.ne.s32.totalorder %s236, %s250
      %p252 = scmp.eq.s32.totalorder %s37, 0
      %p253 = por %p251, %p252
      %s255 = sadd.s32 %s254, 1
      %p258 = scmp.eq.s32.totalorder %s31, 1
      %p259 = scmp.ne.s32.totalorder %s254, %s256
      %p260 = scmp.eq.s32.totalorder %s31, 0
      %p261 = por %p259, %p260
      %p262 = scmp.ne.s32.totalorder %s254, %s256
      %p263 = scmp.eq.s32.totalorder %s36, 1
      %p264 = por %p262, %p263
      %p265 = scmp.ne.s32.totalorder %s256, %s257
      %p266 = scmp.eq.s32.totalorder %s36, 0
      %p267 = por %p265, %p266
      %p268 = scmp.ne.s32.totalorder %s256, %s257
      %p269 = scmp.eq.s32.totalorder %s37, 1
      %p270 = por %p268, %p269
      %p272 = scmp.ne.s32.totalorder %s257, %s271
      %p273 = scmp.eq.s32.totalorder %s37, 0
      %p274 = por %p272, %p273
      %s276 = sadd.s32 %s275, 1
      %p279 = scmp.eq.s32.totalorder %s31, 1
      %p280 = scmp.ne.s32.totalorder %s275, %s277
      %p281 = scmp.eq.s32.totalorder %s31, 0
      %p282 = por %p280, %p281
      %p283 = scmp.ne.s32.totalorder %s275, %s277
      %p284 = scmp.eq.s32.totalorder %s36, 1
      %p285 = por %p283, %p284
      %p286 = scmp.ne.s32.totalorder %s277, %s278
      %p287 = scmp.eq.s32.totalorder %s36, 0
      %p288 = por %p286, %p287
      %p289 = scmp.ne.s32.totalorder %s277, %s278
      %p290 = scmp.eq.s32.totalorder %s37, 1
      %p291 = por %p289, %p290
      %p293 = scmp.ne.s32.totalorder %s278, %s292
      %p294 = scmp.eq.s32.totalorder %s37, 0
      %p295 = por %p293, %p294
      %s297 = sadd.s32 %s296, 1
      %p300 = scmp.eq.s32.totalorder %s31, 1
      %p301 = scmp.ne.s32.totalorder %s296, %s298
      %p302 = scmp.eq.s32.totalorder %s31, 0
      %p303 = por %p301, %p302
      %p304 = scmp.ne.s32.totalorder %s296, %s298
      %p305 = scmp.eq.s32.totalorder %s36, 1
      %p306 = por %p304, %p305
      %p307 = scmp.ne.s32.totalorder %s298, %s299
      %p308 = scmp.eq.s32.totalorder %s36, 0
      %p309 = por %p307, %p308
      %p310 = scmp.ne.s32.totalorder %s298, %s299
      %p311 = scmp.eq.s32.totalorder %s37, 1
      %p312 = por %p310, %p311
      %p314 = scmp.ne.s32.totalorder %s299, %s313
      %p315 = scmp.eq.s32.totalorder %s37, 0
      %p316 = por %p314, %p315
      %s318 = sadd.s32 %s317, 1
      %p321 = scmp.eq.s32.totalorder %s31, 1
      %p322 = scmp.ne.s32.totalorder %s317, %s319
      %p323 = scmp.eq.s32.totalorder %s31, 0
      %p324 = por %p322, %p323
      %p325 = scmp.ne.s32.totalorder %s317, %s319
      %p326 = scmp.eq.s32.totalorder %s36, 1
      %p327 = por %p325, %p326
      %p328 = scmp.ne.s32.totalorder %s319, %s320
      %p329 = scmp.eq.s32.totalorder %s36, 0
      %p330 = por %p328, %p329
      %p331 = scmp.ne.s32.totalorder %s319, %s320
      %p332 = scmp.eq.s32.totalorder %s37, 1
      %p333 = por %p331, %p332
      %p335 = scmp.ne.s32.totalorder %s320, %s334
      %p336 = scmp.eq.s32.totalorder %s37, 0
      %p337 = por %p335, %p336
      %s339 = sadd.s32 %s338, 1
      %p342 = scmp.eq.s32.totalorder %s31, 1
      %p343 = scmp.ne.s32.totalorder %s338, %s340
      %p344 = scmp.eq.s32.totalorder %s31, 0
      %p345 = por %p343, %p344
      %p346 = scmp.ne.s32.totalorder %s338, %s340
      %p347 = scmp.eq.s32.totalorder %s36, 1
      %p348 = por %p346, %p347
      %p349 = scmp.ne.s32.totalorder %s340, %s341
      %p350 = scmp.eq.s32.totalorder %s36, 0
      %p351 = por %p349, %p350
      %p352 = scmp.ne.s32.totalorder %s340, %s341
      %p353 = scmp.eq.s32.totalorder %s37, 1
      %p354 = por %p352, %p353
      %p356 = scmp.ne.s32.totalorder %s341, %s355
      %p357 = scmp.eq.s32.totalorder %s37, 0
      %p358 = por %p356, %p357
      %s359 = ssub.s32 %s31, %s38
      %p360 = scmp.eq.s32.totalorder %s359, 0
      %s362 = sadd.s32 %s361, 1
      %s363 = scalar_select %p360, %s361, %s362
      %p366 = pneg %p360
      %p367 = scmp.eq.s32.totalorder %s31, 1
      %p368 = por %p366, %p367
      %p369 = scmp.ne.s32.totalorder %s361, %s364
      %p370 = scmp.eq.s32.totalorder %s31, 0
      %p371 = por %p369, %p370
      %p372 = scmp.ne.s32.totalorder %s361, %s364
      %p373 = scmp.eq.s32.totalorder %s36, 1
      %p374 = por %p372, %p373
      %p375 = scmp.ne.s32.totalorder %s364, %s365
      %p376 = scmp.eq.s32.totalorder %s36, 0
      %p377 = por %p375, %p376
      %p378 = scmp.ne.s32.totalorder %s364, %s365
      %p379 = scmp.eq.s32.totalorder %s37, 1
      %p380 = por %p378, %p379
      %p382 = scmp.ne.s32.totalorder %s365, %s381
      %p383 = scmp.eq.s32.totalorder %s37, 0
      %p384 = por %p382, %p383
      %p385 = scmp.le.s32.totalorder 1, %s31
      %p386 = scmp.lt.s32.totalorder %s31, 3
      %p387 = pnand %p385, %p386
      %p388 = pneg %p387
      // Predicated region
      $region9: #{tpu_custom_call.1} parent=5 // pred_check
        _
      $region10: #{tpu_custom_call.1} parent=5 // pred_check_branch
        %390 = sbr.rel (%p387) target = $region12
      $region11: #{tpu_custom_call.1} parent=5 // pred_region
        %s391 = ssub.s32 %s31, 1
        // Predicated region
        $region13: #{tpu_custom_call.1} parent=11 // pred_check
          %p392 = pneg %p78
        $region14: #{tpu_custom_call.1} parent=11 // pred_check_branch
          %394 = sbr.rel (%p392) target = $region16
        $region15: #{tpu_custom_call.1} parent=11 // pred_region
          %396 = vsyncadd [#allocation6], 0
          %s397 = sshll.u32 %s1, 4
          %s398 = int_to_ptr.hbm [resolvable:$true] %s397
          %s399 = sshll.u32 [#allocation5], 4
          %s400 = int_to_ptr.vmem [resolvable:$true] %s399
          %405 = dma.hbm_to_vmem [thread:$0]  %s398, 1024, %s400, [#allocation6], 64, 64, 4
        $region16: #{tpu_custom_call.1} parent=11 // pred_fallthru
          _
        // Predicated region
        $region17: #{tpu_custom_call.1} parent=11 // pred_check
          %p406 = pneg %p99
        $region18: #{tpu_custom_call.1} parent=11 // pred_check_branch
          %408 = sbr.rel (%p406) target = $region20
        $region19: #{tpu_custom_call.1} parent=11 // pred_region
          _
        $region20: #{tpu_custom_call.1} parent=11 // pred_fallthru
          _
        // Predicated region
        $region21: #{tpu_custom_call.1} parent=11 // pred_check
          %p409 = pneg %p120
        $region22: #{tpu_custom_call.1} parent=11 // pred_check_branch
          %411 = sbr.rel (%p409) target = $region24
        $region23: #{tpu_custom_call.1} parent=11 // pred_region
          %413 = vsyncadd [#allocation6], 0
          %s414 = sshll.u32 %s3, 4
          %s415 = int_to_ptr.hbm [resolvable:$true] %s414
          %s416 = sshll.u32 [#allocation7], 4
          %s417 = int_to_ptr.vmem [resolvable:$true] %s416
          %422 = dma.hbm_to_vmem [thread:$0]  %s415, 3072, %s417, [#allocation6], 64, 64, 4
        $region24: #{tpu_custom_call.1} parent=11 // pred_fallthru
          _
        // Predicated region
        $region25: #{tpu_custom_call.1} parent=11 // pred_check
          %p423 = pneg %p141
        $region26: #{tpu_custom_call.1} parent=11 // pred_check_branch
          %425 = sbr.rel (%p423) target = $region28
        $region27: #{tpu_custom_call.1} parent=11 // pred_region
          _
        $region28: #{tpu_custom_call.1} parent=11 // pred_fallthru
          _
        // Predicated region
        $region29: #{tpu_custom_call.1} parent=11 // pred_check
          %p426 = pneg %p162
        $region30: #{tpu_custom_call.1} parent=11 // pred_check_branch
          %428 = sbr.rel (%p426) target = $region32
        $region31: #{tpu_custom_call.1} parent=11 // pred_region
          %430 = vsyncadd [#allocation9], 0
          %s431 = sshll.u32 %s5, 4
          %s432 = int_to_ptr.hbm [resolvable:$true] %s431
          %s433 = sshll.u32 [#allocation8], 4
          %s434 = int_to_ptr.vmem [resolvable:$true] %s433
          %439 = dma.hbm_to_vmem [thread:$0]  %s432, 3072, %s434, [#allocation9], 64, 64, 4
        $region32: #{tpu_custom_call.1} parent=11 // pred_fallthru
          _
        // Predicated region
        $region33: #{tpu_custom_call.1} parent=11 // pred_check
          %p440 = pneg %p183
        $region34: #{tpu_custom_call.1} parent=11 // pred_check_branch
          %442 = sbr.rel (%p440) target = $region36
        $region35: #{tpu_custom_call.1} parent=11 // pred_region
          _
        $region36: #{tpu_custom_call.1} parent=11 // pred_fallthru
          _
        // Predicated region
        $region37: #{tpu_custom_call.1} parent=11 // pred_check
          %p443 = pneg %p204
        $region38: #{tpu_custom_call.1} parent=11 // pred_check_branch
          %445 = sbr.rel (%p443) target = $region40
        $region39: #{tpu_custom_call.1} parent=11 // pred_region
          %447 = vsyncadd [#allocation9], 0
          %s448 = sshll.u32 %s7, 4
          %s449 = int_to_ptr.hbm [resolvable:$true] %s448
          %s450 = sshll.u32 [#allocation10], 4
          %s451 = int_to_ptr.vmem [resolvable:$true] %s450
          %456 = dma.hbm_to_vmem [thread:$0]  %s449, 5120, %s451, [#allocation9], 64, 64, 4
        $region40: #{tpu_custom_call.1} parent=11 // pred_fallthru
          _
        // Predicated region
        $region41: #{tpu_custom_call.1} parent=11 // pred_check
          %p457 = pneg %p225
        $region42: #{tpu_custom_call.1} parent=11 // pred_check_branch
          %459 = sbr.rel (%p457) target = $region44
        $region43: #{tpu_custom_call.1} parent=11 // pred_region
          _
        $region44: #{tpu_custom_call.1} parent=11 // pred_fallthru
          _
        // Predicated region
        $region45: #{tpu_custom_call.1} parent=11 // pred_check
          %p460 = pneg %p246
        $region46: #{tpu_custom_call.1} parent=11 // pred_check_branch
          %462 = sbr.rel (%p460) target = $region48
        $region47: #{tpu_custom_call.1} parent=11 // pred_region
          %464 = vsyncadd [#allocation12], 0
          %s465 = sshll.u32 %s9, 4
          %s466 = int_to_ptr.hbm [resolvable:$true] %s465
          %s467 = sshll.u32 [#allocation11], 4
          %s468 = int_to_ptr.vmem [resolvable:$true] %s467
          %473 = dma.hbm_to_vmem [thread:$0]  %s466, 5120, %s468, [#allocation12], 64, 64, 4
        $region48: #{tpu_custom_call.1} parent=11 // pred_fallthru
          _
        // Predicated region
        $region49: #{tpu_custom_call.1} parent=11 // pred_check
          %p474 = pneg %p267
        $region50: #{tpu_custom_call.1} parent=11 // pred_check_branch
          %476 = sbr.rel (%p474) target = $region52
        $region51: #{tpu_custom_call.1} parent=11 // pred_region
          _
        $region52: #{tpu_custom_call.1} parent=11 // pred_fallthru
          _
        // Predicated region
        $region53: #{tpu_custom_call.1} parent=11 // pred_check
          %p477 = pneg %p288
        $region54: #{tpu_custom_call.1} parent=11 // pred_check_branch
          %479 = sbr.rel (%p477) target = $region56
        $region55: #{tpu_custom_call.1} parent=11 // pred_region
          %481 = vsyncadd [#allocation12], 0
          %s482 = sshll.u32 %s11, 4
          %s483 = int_to_ptr.hbm [resolvable:$true] %s482
          %s484 = sshll.u32 [#allocation13], 4
          %s485 = int_to_ptr.vmem [resolvable:$true] %s484
          %490 = dma.hbm_to_vmem [thread:$0]  %s483, 3072, %s485, [#allocation12], 64, 64, 4
        $region56: #{tpu_custom_call.1} parent=11 // pred_fallthru
          _
        // Predicated region
        $region57: #{tpu_custom_call.1} parent=11 // pred_check
          %p491 = pneg %p309
        $region58: #{tpu_custom_call.1} parent=11 // pred_check_branch
          %493 = sbr.rel (%p491) target = $region60
        $region59: #{tpu_custom_call.1} parent=11 // pred_region
          _
        $region60: #{tpu_custom_call.1} parent=11 // pred_fallthru
          _
        // Predicated region
        $region61: #{tpu_custom_call.1} parent=11 // pred_check
          %p494 = pneg %p330
        $region62: #{tpu_custom_call.1} parent=11 // pred_check_branch
          %496 = sbr.rel (%p494) target = $region64
        $region63: #{tpu_custom_call.1} parent=11 // pred_region
          %498 = vsyncadd [#allocation15], 0
          %s499 = sshll.u32 %s13, 4
          %s500 = int_to_ptr.hbm [resolvable:$true] %s499
          %s501 = sshll.u32 [#allocation14], 4
          %s502 = int_to_ptr.vmem [resolvable:$true] %s501
          %507 = dma.hbm_to_vmem [thread:$0]  %s500, 1024, %s502, [#allocation15], 64, 64, 4
        $region64: #{tpu_custom_call.1} parent=11 // pred_fallthru
          _
        // Predicated region
        $region65: #{tpu_custom_call.1} parent=11 // pred_check
          %p508 = pneg %p351
        $region66: #{tpu_custom_call.1} parent=11 // pred_check_branch
          %510 = sbr.rel (%p508) target = $region68
        $region67: #{tpu_custom_call.1} parent=11 // pred_region
          _
        $region68: #{tpu_custom_call.1} parent=11 // pred_fallthru
          _
      $region12: #{tpu_custom_call.1} parent=5 // pred_fallthru
        _
      %p511 = scmp.lt.s32.totalorder %s31, 2
      // Predicated region
      $region69: #{tpu_custom_call.1} parent=5 // pred_check
        %p512 = pneg %p511
      $region70: #{tpu_custom_call.1} parent=5 // pred_check_branch
        %514 = sbr.rel (%p512) target = $region72
      $region71: #{tpu_custom_call.1} parent=5 // pred_region
        // Predicated region
        $region73: #{tpu_custom_call.1} parent=71 // pred_check
          %p515 = pneg %p51
        $region74: #{tpu_custom_call.1} parent=71 // pred_check_branch
          %517 = sbr.rel (%p515) target = $region76
        $region75: #{tpu_custom_call.1} parent=71 // pred_region
          %s518 = sand.u32 %s41, 1
          %s519 = scalar_lea.sflag [#allocation3], %s518
          %s520 = sand.u32 %s41, 1
          %s521 = smul.addr %s520, 16
          %s522 = scalar_lea.vmem [#allocation2], %s521
          %524 = vsyncadd %s519, 0
          %s525 = smul.addr %s31, 2
          %s526 = smul.addr %s525, 8
          %s527 = scalar_lea.hbm %s0, %s526
          %s528 = sshll.u32 %s527, 4
          %s529 = int_to_ptr.hbm [resolvable:$true] %s528
          %s530 = sshll.u32 %s522, 4
          %s531 = int_to_ptr.vmem [resolvable:$true] %s530
          %536 = dma.hbm_to_vmem [thread:$0]  %s529, 256, %s531, %s519, 128, 128, 8
        $region76: #{tpu_custom_call.1} parent=71 // pred_fallthru
          _
      $region72: #{tpu_custom_call.1} parent=5 // pred_fallthru
        _
      %p537 = scmp.le.s32.totalorder 1, %s31
      %p538 = scmp.lt.s32.totalorder %s31, 3
      %p539 = pnand %p537, %p538
      %p540 = pneg %p539
      // Predicated region
      $region77: #{tpu_custom_call.1} parent=5 // pred_check
        _
      $region78: #{tpu_custom_call.1} parent=5 // pred_check_branch
        %542 = sbr.rel (%p539) target = $region80
      $region79: #{tpu_custom_call.1} parent=5 // pred_region
        %s543 = ssub.s32 %s31, 1
        %s544 = sand.u32 %s44, 1
        %s545 = scalar_lea.sflag [#allocation3], %s544
        %s546 = sand.u32 %s44, 1
        %s547 = smul.addr %s546, 16
        %s548 = scalar_lea.vmem [#allocation2], %s547
        // Predicated region
        $region81: #{tpu_custom_call.1} parent=79 // pred_check
          %p549 = pneg %p57
        $region82: #{tpu_custom_call.1} parent=79 // pred_check_branch
          %551 = sbr.rel (%p549) target = $region84
        $region83: #{tpu_custom_call.1} parent=79 // pred_region
          %553 = dma.done %s545, 256
        $region84: #{tpu_custom_call.1} parent=79 // pred_fallthru
          _
        // Predicated region
        $region85: #{tpu_custom_call.1} parent=79 // pred_check
          %p554 = pneg %p78
        $region86: #{tpu_custom_call.1} parent=79 // pred_check_branch
          %556 = sbr.rel (%p554) target = $region88
        $region87: #{tpu_custom_call.1} parent=79 // pred_region
          %558 = dma.done [#allocation6], 1024
        $region88: #{tpu_custom_call.1} parent=79 // pred_fallthru
          _
        // Predicated region
        $region89: #{tpu_custom_call.1} parent=79 // pred_check
          %p559 = pneg %p120
        $region90: #{tpu_custom_call.1} parent=79 // pred_check_branch
          %561 = sbr.rel (%p559) target = $region92
        $region91: #{tpu_custom_call.1} parent=79 // pred_region
          %563 = dma.done [#allocation6], 3072
        $region92: #{tpu_custom_call.1} parent=79 // pred_fallthru
          _
        // Predicated region
        $region93: #{tpu_custom_call.1} parent=79 // pred_check
          %p564 = pneg %p162
        $region94: #{tpu_custom_call.1} parent=79 // pred_check_branch
          %566 = sbr.rel (%p564) target = $region96
        $region95: #{tpu_custom_call.1} parent=79 // pred_region
          %568 = dma.done [#allocation9], 3072
        $region96: #{tpu_custom_call.1} parent=79 // pred_fallthru
          _
        // Predicated region
        $region97: #{tpu_custom_call.1} parent=79 // pred_check
          %p569 = pneg %p204
        $region98: #{tpu_custom_call.1} parent=79 // pred_check_branch
          %571 = sbr.rel (%p569) target = $region100
        $region99: #{tpu_custom_call.1} parent=79 // pred_region
          %573 = dma.done [#allocation9], 5120
        $region100: #{tpu_custom_call.1} parent=79 // pred_fallthru
          _
        // Predicated region
        $region101: #{tpu_custom_call.1} parent=79 // pred_check
          %p574 = pneg %p246
        $region102: #{tpu_custom_call.1} parent=79 // pred_check_branch
          %576 = sbr.rel (%p574) target = $region104
        $region103: #{tpu_custom_call.1} parent=79 // pred_region
          %578 = dma.done [#allocation12], 5120
        $region104: #{tpu_custom_call.1} parent=79 // pred_fallthru
          _
        // Predicated region
        $region105: #{tpu_custom_call.1} parent=79 // pred_check
          %p579 = pneg %p288
        $region106: #{tpu_custom_call.1} parent=79 // pred_check_branch
          %581 = sbr.rel (%p579) target = $region108
        $region107: #{tpu_custom_call.1} parent=79 // pred_region
          %583 = dma.done [#allocation12], 3072
        $region108: #{tpu_custom_call.1} parent=79 // pred_fallthru
          _
        // Predicated region
        $region109: #{tpu_custom_call.1} parent=79 // pred_check
          %p584 = pneg %p330
        $region110: #{tpu_custom_call.1} parent=79 // pred_check_branch
          %586 = sbr.rel (%p584) target = $region112
        $region111: #{tpu_custom_call.1} parent=79 // pred_region
          %588 = dma.done [#allocation15], 1024
        $region112: #{tpu_custom_call.1} parent=79 // pred_fallthru
          _
        %s589 = sand.u32 %s44, 1
        %s590 = scalar_lea.sflag [#allocation3], %s589
        %s591 = sand.u32 %s44, 1
        %s592 = smul.addr %s591, 16
        %s593 = scalar_lea.vmem [#allocation2], %s592
        %p594 = pneg %p57
        %p595 = pneg %p54
        %p596 = pneg %p78
        %p597 = pneg %p75
        %p598 = pneg %p99
        %p599 = pneg %p96
        %p600 = pneg %p120
        %p601 = pneg %p117
        %p602 = pneg %p141
        %p603 = pneg %p138
        %p604 = pneg %p162
        %p605 = pneg %p159
        %p606 = pneg %p183
        %p607 = pneg %p180
        %p608 = pneg %p204
        %p609 = pneg %p201
        %p610 = pneg %p225
        %p611 = pneg %p222
        %p612 = pneg %p246
        %p613 = pneg %p243
        %p614 = pneg %p267
        %p615 = pneg %p264
        %p616 = pneg %p288
        %p617 = pneg %p285
        %p618 = pneg %p309
        %p619 = pneg %p306
        %p620 = pneg %p330
        %p621 = pneg %p327
        %p622 = pneg %p351
        %p623 = pneg %p348
        %p624 = pneg %p377
        %p625 = pneg %p374
        %s626 = sand.u32 %s364, 1
        %s627 = scalar_lea.sflag [#allocation4], %s626
        %s628 = sand.u32 %s364, 1
        %s629 = smul.addr %s628, 16
        %s630 = scalar_lea.vmem [#allocation16], %s629
        %v631 = vld [vmem:[%s548] sm:$0xff]
        %v632 = vld [vmem:[%s548 + $0x8] sm:$0xff]
        %v633 = vlaneseq
        %v634 = vshrl.u32 %v633, 7
        %v635 = vadd.s32 %v634, 8
        %vm636 = vcmp.lt.s32.totalorder %v634, 0
        %v637 = vsub.s32 0, %v634
        %v638 = vsel %vm636, %v637, %v634
        %v639 = vshrl.u32 %v638, 4
        %v640 = vand.u32 %v638, 15
        %v641 = vsub.s32 0, %v640
        %v642 = vsel %vm636, %v641, %v640
        %vm643 = vcmp.lt.s32.totalorder %v635, 0
        %v644 = vsub.s32 0, %v635
        %v645 = vsel %vm643, %v644, %v635
        %v646 = vshrl.u32 %v645, 4
        %v647 = vand.u32 %v645, 15
        %v648 = vsub.s32 0, %v647
        %v649 = vsel %vm643, %v648, %v647
        %vm650 = vcmp.ne.s32.totalorder %v642, 0
        %vm651 = vcmp.ne.s32.totalorder %v649, 0
        %vm652 = vcmp.lt.s32.totalorder %v642, 0
        %vm653 = vcmp.lt.s32.totalorder %v649, 0
        %vm654 = vmand %vm652, %vm650
        %vm655 = vmand %vm653, %vm651
        %v656 = vadd.s32 %v642, 16
        %v657 = vadd.s32 %v649, 16
        %v658 = vsel %vm654, %v656, %v642
        %v659 = vsel %vm655, %v657, %v649
        %vm660 = vcmp.ge.s32.totalorder %v658, 2
        %vm661 = vcmp.ge.s32.totalorder %v659, 2
        %vm662 = vcmp.lt.s32.totalorder %v658, 18
        %vm663 = vcmp.lt.s32.totalorder %v659, 18
        %vm664 = vmand %vm660, %vm662
        %vm665 = vmand %vm661, %vm663
        %vm666 = vcmp.ge.s32.totalorder %v658, 1
        %vm667 = vcmp.ge.s32.totalorder %v659, 1
        %vm668 = vcmp.lt.s32.totalorder %v658, 17
        %vm669 = vcmp.lt.s32.totalorder %v659, 17
        %vm670 = vmand %vm666, %vm668
        %vm671 = vmand %vm667, %vm669
        %vm672 = vcmp.ge.s32.totalorder %v658, 4294967295
        %vm673 = vcmp.ge.s32.totalorder %v659, 4294967295
        %vm674 = vcmp.lt.s32.totalorder %v658, 15
        %vm675 = vcmp.lt.s32.totalorder %v659, 15
        %vm676 = vmand %vm672, %vm674
        %vm677 = vmand %vm673, %vm675
        %vm678 = vcmp.ge.s32.totalorder %v658, 4294967294
        %vm679 = vcmp.ge.s32.totalorder %v659, 4294967294
        %vm680 = vcmp.lt.s32.totalorder %v658, 14
        %vm681 = vcmp.lt.s32.totalorder %v659, 14
        %vm682 = vmand %vm678, %vm680
        %vm683 = vmand %vm679, %vm681
        %v684 = vrot.slane %v631, 6
        %v685 = vrot.slane %v632, 6
        %vm686 = vcmp.lt.s32.totalorder %v634, 2
        %v687 = vsel %vm686, %v684, %v685
        %v688 = vsel %vm686, %v685, %v684
        %v689 = vsel %vm664, %v688, 0.0
        %v690 = vsel %vm665, %v687, 0.0
        %v691 = vrot.slane %v631, 7
        %v692 = vrot.slane %v632, 7
        %vm693 = vcmp.lt.s32.totalorder %v634, 1
        %v694 = vsel %vm693, %v691, %v692
        %v695 = vsel %vm693, %v692, %v691
        %v696 = vsel %vm670, %v695, 0.0
        %v697 = vsel %vm671, %v694, 0.0
        %v698 = vrot.slane %v631, 1
        %v699 = vrot.slane %v632, 1
        %vm700 = vcmp.lt.s32.totalorder %v634, 7
        %v701 = vsel %vm700, %v698, %v699
        %v702 = vsel %vm700, %v699, %v698
        %v703 = vsel %vm676, %v701, 0.0
        %v704 = vsel %vm677, %v702, 0.0
        %v705 = vrot.slane %v631, 2
        %v706 = vrot.slane %v632, 2
        %vm707 = vcmp.lt.s32.totalorder %v634, 6
        %v708 = vsel %vm707, %v705, %v706
        %v709 = vsel %vm707, %v706, %v705
        %v710 = vsel %vm682, %v708, 0.0
        %v711 = vsel %vm683, %v709, 0.0
        %v712 = vpack.c.bf16 %v697, %v696
        %v713 = vpack.c.bf16 %v632, %v631
        %v714 = vpack.c.bf16 %v704, %v703
        %v715 = vpack.c.bf16 %v690, %v689
        %v716 = vpack.c.bf16 %v711, %v710
        %v717 = vld [vmem:[#allocation5] sm:$0xf]
        %v718 = vld [vmem:[#allocation5 + $0x4] sm:$0xf]
        %v719 = vld [vmem:[#allocation5 + $0x8] sm:$0xf]
        %v720 = vld [vmem:[#allocation5 + $0xc] sm:$0xf]
        %v721 = vld [vmem:[#allocation5 + $0x10] sm:$0xf]
        %v722 = vld [vmem:[#allocation5 + $0x14] sm:$0xf]
        %v723 = vld [vmem:[#allocation5 + $0x18] sm:$0xf]
        %v724 = vld [vmem:[#allocation5 + $0x1c] sm:$0xf]
        %v725 = vld [vmem:[#allocation5 + $0x20] sm:$0xf]
        %v726 = vld [vmem:[#allocation5 + $0x24] sm:$0xf]
        %v727 = vld [vmem:[#allocation5 + $0x28] sm:$0xf]
        %v728 = vld [vmem:[#allocation5 + $0x2c] sm:$0xf]
        %v729 = vld [vmem:[#allocation5 + $0x30] sm:$0xf]
        %v730 = vld [vmem:[#allocation5 + $0x34] sm:$0xf]
        %v731 = vld [vmem:[#allocation5 + $0x38] sm:$0xf]
        %v732 = vld [vmem:[#allocation5 + $0x3c] sm:$0xf]
        %v733 = vld [vmem:[%s2] sm:$0x1]
        %v735 = vperm.slane %v733, 0
        %v753 = vunpack.c.l.b16 %v717
        %v754 = vunpack.c.l.b16 %v718
        %v755 = vunpack.c.l.b16 %v719
        %v756 = vunpack.c.l.b16 %v720
        %v757 = vunpack.c.l.b16 %v721
        %v758 = vunpack.c.l.b16 %v722
        %v759 = vunpack.c.l.b16 %v723
        %v760 = vunpack.c.l.b16 %v724
        %v761 = vunpack.c.l.b16 %v725
        %v762 = vunpack.c.l.b16 %v726
        %v763 = vunpack.c.l.b16 %v727
        %v764 = vunpack.c.l.b16 %v728
        %v765 = vunpack.c.l.b16 %v729
        %v766 = vunpack.c.l.b16 %v730
        %v767 = vunpack.c.l.b16 %v731
        %v768 = vunpack.c.l.b16 %v732
        %v769 = vpack.c.b16 %v754, %v753
        %v770 = vpack.c.b16 %v756, %v755
        %v771 = vpack.c.b16 %v758, %v757
        %v772 = vpack.c.b16 %v760, %v759
        %v773 = vpack.c.b16 %v762, %v761
        %v774 = vpack.c.b16 %v764, %v763
        %v775 = vpack.c.b16 %v766, %v765
        %v776 = vpack.c.b16 %v768, %v767
        %785 = vmatpush.bf16.msra.mxu0 %v776
        %786 = vmatpush.bf16.msra.mxu0 %v775
        %787 = vmatpush.bf16.msra.mxu0 %v774
        %788 = vmatpush.bf16.msra.mxu0 %v773
        %789 = vmatpush.bf16.msra.mxu0 %v772
        %790 = vmatpush.bf16.msra.mxu0 %v771
        %791 = vmatpush.bf16.msra.mxu0 %v770
        %792 = vmatpush.bf16.msra.mxu0 %v769
        %793 = vmatmul.bf16.gmra.mxu0 %v713
        %v794 = vpop.f32.mrf.mxu0
        %v795 = vadd.f32 %v735, %v794
        %v796 = vpop.f32.mrf.mxu0
        %v797 = vadd.f32 %v735, %v796
        %798 = vdwg.mxu0
        %v799 = vmul.f32 %v795, %v795
        %v800 = vmul.f32 %v797, %v797
        %v801 = vld [vmem:[#allocation7] sm:$0xf]
        %v802 = vld [vmem:[#allocation7 + $0x4] sm:$0xf]
        %v803 = vld [vmem:[#allocation7 + $0x8] sm:$0xf]
        %v804 = vld [vmem:[#allocation7 + $0xc] sm:$0xf]
        %v805 = vld [vmem:[#allocation7 + $0x10] sm:$0xf]
        %v806 = vld [vmem:[#allocation7 + $0x14] sm:$0xf]
        %v807 = vld [vmem:[#allocation7 + $0x18] sm:$0xf]
        %v808 = vld [vmem:[#allocation7 + $0x1c] sm:$0xf]
        %v809 = vld [vmem:[#allocation7 + $0x20] sm:$0xf]
        %v810 = vld [vmem:[#allocation7 + $0x24] sm:$0xf]
        %v811 = vld [vmem:[#allocation7 + $0x28] sm:$0xf]
        %v812 = vld [vmem:[#allocation7 + $0x2c] sm:$0xf]
        %v813 = vld [vmem:[#allocation7 + $0x30] sm:$0xf]
        %v814 = vld [vmem:[#allocation7 + $0x34] sm:$0xf]
        %v815 = vld [vmem:[#allocation7 + $0x38] sm:$0xf]
        %v816 = vld [vmem:[#allocation7 + $0x3c] sm:$0xf]
        %v817 = vld [vmem:[#allocation7 + $0x40] sm:$0xf]
        %v818 = vld [vmem:[#allocation7 + $0x44] sm:$0xf]
        %v819 = vld [vmem:[#allocation7 + $0x48] sm:$0xf]
        %v820 = vld [vmem:[#allocation7 + $0x4c] sm:$0xf]
        %v821 = vld [vmem:[#allocation7 + $0x50] sm:$0xf]
        %v822 = vld [vmem:[#allocation7 + $0x54] sm:$0xf]
        %v823 = vld [vmem:[#allocation7 + $0x58] sm:$0xf]
        %v824 = vld [vmem:[#allocation7 + $0x5c] sm:$0xf]
        %v825 = vld [vmem:[#allocation7 + $0x60] sm:$0xf]
        %v826 = vld [vmem:[#allocation7 + $0x64] sm:$0xf]
        %v827 = vld [vmem:[#allocation7 + $0x68] sm:$0xf]
        %v828 = vld [vmem:[#allocation7 + $0x6c] sm:$0xf]
        %v829 = vld [vmem:[#allocation7 + $0x70] sm:$0xf]
        %v830 = vld [vmem:[#allocation7 + $0x74] sm:$0xf]
        %v831 = vld [vmem:[#allocation7 + $0x78] sm:$0xf]
        %v832 = vld [vmem:[#allocation7 + $0x7c] sm:$0xf]
        %v833 = vld [vmem:[#allocation7 + $0x80] sm:$0xf]
        %v834 = vld [vmem:[#allocation7 + $0x84] sm:$0xf]
        %v835 = vld [vmem:[#allocation7 + $0x88] sm:$0xf]
        %v836 = vld [vmem:[#allocation7 + $0x8c] sm:$0xf]
        %v837 = vld [vmem:[#allocation7 + $0x90] sm:$0xf]
        %v838 = vld [vmem:[#allocation7 + $0x94] sm:$0xf]
        %v839 = vld [vmem:[#allocation7 + $0x98] sm:$0xf]
        %v840 = vld [vmem:[#allocation7 + $0x9c] sm:$0xf]
        %v841 = vld [vmem:[#allocation7 + $0xa0] sm:$0xf]
        %v842 = vld [vmem:[#allocation7 + $0xa4] sm:$0xf]
        %v843 = vld [vmem:[#allocation7 + $0xa8] sm:$0xf]
        %v844 = vld [vmem:[#allocation7 + $0xac] sm:$0xf]
        %v845 = vld [vmem:[#allocation7 + $0xb0] sm:$0xf]
        %v846 = vld [vmem:[#allocation7 + $0xb4] sm:$0xf]
        %v847 = vld [vmem:[#allocation7 + $0xb8] sm:$0xf]
        %v848 = vld [vmem:[#allocation7 + $0xbc] sm:$0xf]
        %v849 = vld [vmem:[%s4] sm:$0x1]
        %v851 = vperm.slane %v849, 0
        %v901 = vunpack.c.l.b16 %v801
        %v902 = vunpack.c.l.b16 %v802
        %v903 = vunpack.c.l.b16 %v803
        %v904 = vunpack.c.l.b16 %v804
        %v905 = vunpack.c.l.b16 %v805
        %v906 = vunpack.c.l.b16 %v806
        %v907 = vunpack.c.l.b16 %v807
        %v908 = vunpack.c.l.b16 %v808
        %v909 = vunpack.c.l.b16 %v809
        %v910 = vunpack.c.l.b16 %v810
        %v911 = vunpack.c.l.b16 %v811
        %v912 = vunpack.c.l.b16 %v812
        %v913 = vunpack.c.l.b16 %v813
        %v914 = vunpack.c.l.b16 %v814
        %v915 = vunpack.c.l.b16 %v815
        %v916 = vunpack.c.l.b16 %v816
        %v917 = vunpack.c.l.b16 %v817
        %v918 = vunpack.c.l.b16 %v818
        %v919 = vunpack.c.l.b16 %v819
        %v920 = vunpack.c.l.b16 %v820
        %v921 = vunpack.c.l.b16 %v821
        %v922 = vunpack.c.l.b16 %v822
        %v923 = vunpack.c.l.b16 %v823
        %v924 = vunpack.c.l.b16 %v824
        %v925 = vunpack.c.l.b16 %v825
        %v926 = vunpack.c.l.b16 %v826
        %v927 = vunpack.c.l.b16 %v827
        %v928 = vunpack.c.l.b16 %v828
        %v929 = vunpack.c.l.b16 %v829
        %v930 = vunpack.c.l.b16 %v830
        %v931 = vunpack.c.l.b16 %v831
        %v932 = vunpack.c.l.b16 %v832
        %v933 = vunpack.c.l.b16 %v833
        %v934 = vunpack.c.l.b16 %v834
        %v935 = vunpack.c.l.b16 %v835
        %v936 = vunpack.c.l.b16 %v836
        %v937 = vunpack.c.l.b16 %v837
        %v938 = vunpack.c.l.b16 %v838
        %v939 = vunpack.c.l.b16 %v839
        %v940 = vunpack.c.l.b16 %v840
        %v941 = vunpack.c.l.b16 %v841
        %v942 = vunpack.c.l.b16 %v842
        %v943 = vunpack.c.l.b16 %v843
        %v944 = vunpack.c.l.b16 %v844
        %v945 = vunpack.c.l.b16 %v845
        %v946 = vunpack.c.l.b16 %v846
        %v947 = vunpack.c.l.b16 %v847
        %v948 = vunpack.c.l.b16 %v848
        %v949 = vpack.c.b16 %v902, %v901
        %v950 = vpack.c.b16 %v904, %v903
        %v951 = vpack.c.b16 %v906, %v905
        %v952 = vpack.c.b16 %v908, %v907
        %v953 = vpack.c.b16 %v910, %v909
        %v954 = vpack.c.b16 %v912, %v911
        %v955 = vpack.c.b16 %v914, %v913
        %v956 = vpack.c.b16 %v916, %v915
        %v957 = vpack.c.b16 %v918, %v917
        %v958 = vpack.c.b16 %v920, %v919
        %v959 = vpack.c.b16 %v922, %v921
        %v960 = vpack.c.b16 %v924, %v923
        %v961 = vpack.c.b16 %v926, %v925
        %v962 = vpack.c.b16 %v928, %v927
        %v963 = vpack.c.b16 %v930, %v929
        %v964 = vpack.c.b16 %v932, %v931
        %v965 = vpack.c.b16 %v934, %v933
        %v966 = vpack.c.b16 %v936, %v935
        %v967 = vpack.c.b16 %v938, %v937
        %v968 = vpack.c.b16 %v940, %v939
        %v969 = vpack.c.b16 %v942, %v941
        %v970 = vpack.c.b16 %v944, %v943
        %v971 = vpack.c.b16 %v946, %v945
        %v972 = vpack.c.b16 %v948, %v947
        %997 = vmatpush.bf16.msra.mxu0 %v956
        %998 = vmatpush.bf16.msra.mxu0 %v955
        %999 = vmatpush.bf16.msra.mxu0 %v954
        %1000 = vmatpush.bf16.msra.mxu0 %v953
        %1001 = vmatpush.bf16.msra.mxu0 %v952
        %1002 = vmatpush.bf16.msra.mxu0 %v951
        %1003 = vmatpush.bf16.msra.mxu0 %v950
        %1004 = vmatpush.bf16.msra.mxu0 %v949
        %1005 = vmatmul.bf16.gmra.mxu0 %v712
        %v1006 = vpop.f32.mrf.mxu0
        %v1007 = vadd.f32 %v851, %v1006
        %v1008 = vpop.f32.mrf.mxu0
        %v1009 = vadd.f32 %v851, %v1008
        %1010 = vdwg.mxu0
        %1011 = vmatpush.bf16.msra.mxu0 %v964
        %1012 = vmatpush.bf16.msra.mxu0 %v963
        %1013 = vmatpush.bf16.msra.mxu0 %v962
        %1014 = vmatpush.bf16.msra.mxu0 %v961
        %1015 = vmatpush.bf16.msra.mxu0 %v960
        %1016 = vmatpush.bf16.msra.mxu0 %v959
        %1017 = vmatpush.bf16.msra.mxu0 %v958
        %1018 = vmatpush.bf16.msra.mxu0 %v957
        %1019 = vmatmul.bf16.gmra.mxu0 %v713
        %v1020 = vpop.f32.mrf.mxu0
        %v1021 = vadd.f32 %v1007, %v1020
        %v1022 = vpop.f32.mrf.mxu0
        %v1023 = vadd.f32 %v1009, %v1022
        %1024 = vdwg.mxu0
        %1025 = vmatpush.bf16.msra.mxu0 %v972
        %1026 = vmatpush.bf16.msra.mxu0 %v971
        %1027 = vmatpush.bf16.msra.mxu0 %v970
        %1028 = vmatpush.bf16.msra.mxu0 %v969
        %1029 = vmatpush.bf16.msra.mxu0 %v968
        %1030 = vmatpush.bf16.msra.mxu0 %v967
        %1031 = vmatpush.bf16.msra.mxu0 %v966
        %1032 = vmatpush.bf16.msra.mxu0 %v965
        %1033 = vmatmul.bf16.gmra.mxu0 %v714
        %v1034 = vpop.f32.mrf.mxu0
        %v1035 = vadd.f32 %v1021, %v1034
        %v1036 = vpop.f32.mrf.mxu0
        %v1037 = vadd.f32 %v1023, %v1036
        %1038 = vdwg.mxu0
        %v1039 = vmax.f32 %v1035, 0.0
        %v1040 = vmax.f32 %v1037, 0.0
        %v1041 = vrot.slane %v1039, 7
        %v1042 = vrot.slane %v1040, 7
        %v1043 = vsel %vm693, %v1041, %v1042
        %v1044 = vsel %vm693, %v1042, %v1041
        %v1045 = vsel %vm670, %v1044, 0.0
        %v1046 = vsel %vm671, %v1043, 0.0
        %v1047 = vrot.slane %v1039, 1
        %v1048 = vrot.slane %v1040, 1
        %v1049 = vsel %vm700, %v1047, %v1048
        %v1050 = vsel %vm700, %v1048, %v1047
        %v1051 = vsel %vm676, %v1049, 0.0
        %v1052 = vsel %vm677, %v1050, 0.0
        %v1053 = vpack.c.bf16 %v1046, %v1045
        %v1054 = vpack.c.bf16 %v1040, %v1039
        %v1055 = vpack.c.bf16 %v1052, %v1051
        %v1056 = vld [vmem:[#allocation8] sm:$0xf]
        %v1057 = vld [vmem:[#allocation8 + $0x4] sm:$0xf]
        %v1058 = vld [vmem:[#allocation8 + $0x8] sm:$0xf]
        %v1059 = vld [vmem:[#allocation8 + $0xc] sm:$0xf]
        %v1060 = vld [vmem:[#allocation8 + $0x10] sm:$0xf]
        %v1061 = vld [vmem:[#allocation8 + $0x14] sm:$0xf]
        %v1062 = vld [vmem:[#allocation8 + $0x18] sm:$0xf]
        %v1063 = vld [vmem:[#allocation8 + $0x1c] sm:$0xf]
        %v1064 = vld [vmem:[#allocation8 + $0x20] sm:$0xf]
        %v1065 = vld [vmem:[#allocation8 + $0x24] sm:$0xf]
        %v1066 = vld [vmem:[#allocation8 + $0x28] sm:$0xf]
        %v1067 = vld [vmem:[#allocation8 + $0x2c] sm:$0xf]
        %v1068 = vld [vmem:[#allocation8 + $0x30] sm:$0xf]
        %v1069 = vld [vmem:[#allocation8 + $0x34] sm:$0xf]
        %v1070 = vld [vmem:[#allocation8 + $0x38] sm:$0xf]
        %v1071 = vld [vmem:[#allocation8 + $0x3c] sm:$0xf]
        %v1072 = vld [vmem:[#allocation8 + $0x40] sm:$0xf]
        %v1073 = vld [vmem:[#allocation8 + $0x44] sm:$0xf]
        %v1074 = vld [vmem:[#allocation8 + $0x48] sm:$0xf]
        %v1075 = vld [vmem:[#allocation8 + $0x4c] sm:$0xf]
        %v1076 = vld [vmem:[#allocation8 + $0x50] sm:$0xf]
        %v1077 = vld [vmem:[#allocation8 + $0x54] sm:$0xf]
        %v1078 = vld [vmem:[#allocation8 + $0x58] sm:$0xf]
        %v1079 = vld [vmem:[#allocation8 + $0x5c] sm:$0xf]
        %v1080 = vld [vmem:[#allocation8 + $0x60] sm:$0xf]
        %v1081 = vld [vmem:[#allocation8 + $0x64] sm:$0xf]
        %v1082 = vld [vmem:[#allocation8 + $0x68] sm:$0xf]
        %v1083 = vld [vmem:[#allocation8 + $0x6c] sm:$0xf]
        %v1084 = vld [vmem:[#allocation8 + $0x70] sm:$0xf]
        %v1085 = vld [vmem:[#allocation8 + $0x74] sm:$0xf]
        %v1086 = vld [vmem:[#allocation8 + $0x78] sm:$0xf]
        %v1087 = vld [vmem:[#allocation8 + $0x7c] sm:$0xf]
        %v1088 = vld [vmem:[#allocation8 + $0x80] sm:$0xf]
        %v1089 = vld [vmem:[#allocation8 + $0x84] sm:$0xf]
        %v1090 = vld [vmem:[#allocation8 + $0x88] sm:$0xf]
        %v1091 = vld [vmem:[#allocation8 + $0x8c] sm:$0xf]
        %v1092 = vld [vmem:[#allocation8 + $0x90] sm:$0xf]
        %v1093 = vld [vmem:[#allocation8 + $0x94] sm:$0xf]
        %v1094 = vld [vmem:[#allocation8 + $0x98] sm:$0xf]
        %v1095 = vld [vmem:[#allocation8 + $0x9c] sm:$0xf]
        %v1096 = vld [vmem:[#allocation8 + $0xa0] sm:$0xf]
        %v1097 = vld [vmem:[#allocation8 + $0xa4] sm:$0xf]
        %v1098 = vld [vmem:[#allocation8 + $0xa8] sm:$0xf]
        %v1099 = vld [vmem:[#allocation8 + $0xac] sm:$0xf]
        %v1100 = vld [vmem:[#allocation8 + $0xb0] sm:$0xf]
        %v1101 = vld [vmem:[#allocation8 + $0xb4] sm:$0xf]
        %v1102 = vld [vmem:[#allocation8 + $0xb8] sm:$0xf]
        %v1103 = vld [vmem:[#allocation8 + $0xbc] sm:$0xf]
        %v1104 = vld [vmem:[%s6] sm:$0x1]
        %v1106 = vperm.slane %v1104, 0
        %v1156 = vunpack.c.l.b16 %v1056
        %v1157 = vunpack.c.l.b16 %v1057
        %v1158 = vunpack.c.l.b16 %v1058
        %v1159 = vunpack.c.l.b16 %v1059
        %v1160 = vunpack.c.l.b16 %v1060
        %v1161 = vunpack.c.l.b16 %v1061
        %v1162 = vunpack.c.l.b16 %v1062
        %v1163 = vunpack.c.l.b16 %v1063
        %v1164 = vunpack.c.l.b16 %v1064
        %v1165 = vunpack.c.l.b16 %v1065
        %v1166 = vunpack.c.l.b16 %v1066
        %v1167 = vunpack.c.l.b16 %v1067
        %v1168 = vunpack.c.l.b16 %v1068
        %v1169 = vunpack.c.l.b16 %v1069
        %v1170 = vunpack.c.l.b16 %v1070
        %v1171 = vunpack.c.l.b16 %v1071
        %v1172 = vunpack.c.l.b16 %v1072
        %v1173 = vunpack.c.l.b16 %v1073
        %v1174 = vunpack.c.l.b16 %v1074
        %v1175 = vunpack.c.l.b16 %v1075
        %v1176 = vunpack.c.l.b16 %v1076
        %v1177 = vunpack.c.l.b16 %v1077
        %v1178 = vunpack.c.l.b16 %v1078
        %v1179 = vunpack.c.l.b16 %v1079
        %v1180 = vunpack.c.l.b16 %v1080
        %v1181 = vunpack.c.l.b16 %v1081
        %v1182 = vunpack.c.l.b16 %v1082
        %v1183 = vunpack.c.l.b16 %v1083
        %v1184 = vunpack.c.l.b16 %v1084
        %v1185 = vunpack.c.l.b16 %v1085
        %v1186 = vunpack.c.l.b16 %v1086
        %v1187 = vunpack.c.l.b16 %v1087
        %v1188 = vunpack.c.l.b16 %v1088
        %v1189 = vunpack.c.l.b16 %v1089
        %v1190 = vunpack.c.l.b16 %v1090
        %v1191 = vunpack.c.l.b16 %v1091
        %v1192 = vunpack.c.l.b16 %v1092
        %v1193 = vunpack.c.l.b16 %v1093
        %v1194 = vunpack.c.l.b16 %v1094
        %v1195 = vunpack.c.l.b16 %v1095
        %v1196 = vunpack.c.l.b16 %v1096
        %v1197 = vunpack.c.l.b16 %v1097
        %v1198 = vunpack.c.l.b16 %v1098
        %v1199 = vunpack.c.l.b16 %v1099
        %v1200 = vunpack.c.l.b16 %v1100
        %v1201 = vunpack.c.l.b16 %v1101
        %v1202 = vunpack.c.l.b16 %v1102
        %v1203 = vunpack.c.l.b16 %v1103
        %v1204 = vpack.c.b16 %v1157, %v1156
        %v1205 = vpack.c.b16 %v1159, %v1158
        %v1206 = vpack.c.b16 %v1161, %v1160
        %v1207 = vpack.c.b16 %v1163, %v1162
        %v1208 = vpack.c.b16 %v1165, %v1164
        %v1209 = vpack.c.b16 %v1167, %v1166
        %v1210 = vpack.c.b16 %v1169, %v1168
        %v1211 = vpack.c.b16 %v1171, %v1170
        %v1212 = vpack.c.b16 %v1173, %v1172
        %v1213 = vpack.c.b16 %v1175, %v1174
        %v1214 = vpack.c.b16 %v1177, %v1176
        %v1215 = vpack.c.b16 %v1179, %v1178
        %v1216 = vpack.c.b16 %v1181, %v1180
        %v1217 = vpack.c.b16 %v1183, %v1182
        %v1218 = vpack.c.b16 %v1185, %v1184
        %v1219 = vpack.c.b16 %v1187, %v1186
        %v1220 = vpack.c.b16 %v1189, %v1188
        %v1221 = vpack.c.b16 %v1191, %v1190
        %v1222 = vpack.c.b16 %v1193, %v1192
        %v1223 = vpack.c.b16 %v1195, %v1194
        %v1224 = vpack.c.b16 %v1197, %v1196
        %v1225 = vpack.c.b16 %v1199, %v1198
        %v1226 = vpack.c.b16 %v1201, %v1200
        %v1227 = vpack.c.b16 %v1203, %v1202
        %1252 = vmatpush.bf16.msra.mxu0 %v1211
        %1253 = vmatpush.bf16.msra.mxu0 %v1210
        %1254 = vmatpush.bf16.msra.mxu0 %v1209
        %1255 = vmatpush.bf16.msra.mxu0 %v1208
        %1256 = vmatpush.bf16.msra.mxu0 %v1207
        %1257 = vmatpush.bf16.msra.mxu0 %v1206
        %1258 = vmatpush.bf16.msra.mxu0 %v1205
        %1259 = vmatpush.bf16.msra.mxu0 %v1204
        %1260 = vmatmul.bf16.gmra.mxu0 %v1053
        %v1261 = vpop.f32.mrf.mxu0
        %v1262 = vadd.f32 %v1106, %v1261
        %v1263 = vpop.f32.mrf.mxu0
        %v1264 = vadd.f32 %v1106, %v1263
        %1265 = vdwg.mxu0
        %1266 = vmatpush.bf16.msra.mxu0 %v1219
        %1267 = vmatpush.bf16.msra.mxu0 %v1218
        %1268 = vmatpush.bf16.msra.mxu0 %v1217
        %1269 = vmatpush.bf16.msra.mxu0 %v1216
        %1270 = vmatpush.bf16.msra.mxu0 %v1215
        %1271 = vmatpush.bf16.msra.mxu0 %v1214
        %1272 = vmatpush.bf16.msra.mxu0 %v1213
        %1273 = vmatpush.bf16.msra.mxu0 %v1212
        %1274 = vmatmul.bf16.gmra.mxu0 %v1054
        %v1275 = vpop.f32.mrf.mxu0
        %v1276 = vadd.f32 %v1262, %v1275
        %v1277 = vpop.f32.mrf.mxu0
        %v1278 = vadd.f32 %v1264, %v1277
        %1279 = vdwg.mxu0
        %1280 = vmatpush.bf16.msra.mxu0 %v1227
        %1281 = vmatpush.bf16.msra.mxu0 %v1226
        %1282 = vmatpush.bf16.msra.mxu0 %v1225
        %1283 = vmatpush.bf16.msra.mxu0 %v1224
        %1284 = vmatpush.bf16.msra.mxu0 %v1223
        %1285 = vmatpush.bf16.msra.mxu0 %v1222
        %1286 = vmatpush.bf16.msra.mxu0 %v1221
        %1287 = vmatpush.bf16.msra.mxu0 %v1220
        %1288 = vmatmul.bf16.gmra.mxu0 %v1055
        %v1289 = vpop.f32.mrf.mxu0
        %v1290 = vadd.f32 %v1276, %v1289
        %v1291 = vpop.f32.mrf.mxu0
        %v1292 = vadd.f32 %v1278, %v1291
        %1293 = vdwg.mxu0
        %v1294 = vmul.f32 %v1290, %v1290
        %v1295 = vmul.f32 %v1292, %v1292
        %v1296 = vld [vmem:[#allocation10] sm:$0xf]
        %v1297 = vld [vmem:[#allocation10 + $0x4] sm:$0xf]
        %v1298 = vld [vmem:[#allocation10 + $0x8] sm:$0xf]
        %v1299 = vld [vmem:[#allocation10 + $0xc] sm:$0xf]
        %v1300 = vld [vmem:[#allocation10 + $0x10] sm:$0xf]
        %v1301 = vld [vmem:[#allocation10 + $0x14] sm:$0xf]
        %v1302 = vld [vmem:[#allocation10 + $0x18] sm:$0xf]
        %v1303 = vld [vmem:[#allocation10 + $0x1c] sm:$0xf]
        %v1304 = vld [vmem:[#allocation10 + $0x20] sm:$0xf]
        %v1305 = vld [vmem:[#allocation10 + $0x24] sm:$0xf]
        %v1306 = vld [vmem:[#allocation10 + $0x28] sm:$0xf]
        %v1307 = vld [vmem:[#allocation10 + $0x2c] sm:$0xf]
        %v1308 = vld [vmem:[#allocation10 + $0x30] sm:$0xf]
        %v1309 = vld [vmem:[#allocation10 + $0x34] sm:$0xf]
        %v1310 = vld [vmem:[#allocation10 + $0x38] sm:$0xf]
        %v1311 = vld [vmem:[#allocation10 + $0x3c] sm:$0xf]
        %v1312 = vld [vmem:[#allocation10 + $0x40] sm:$0xf]
        %v1313 = vld [vmem:[#allocation10 + $0x44] sm:$0xf]
        %v1314 = vld [vmem:[#allocation10 + $0x48] sm:$0xf]
        %v1315 = vld [vmem:[#allocation10 + $0x4c] sm:$0xf]
        %v1316 = vld [vmem:[#allocation10 + $0x50] sm:$0xf]
        %v1317 = vld [vmem:[#allocation10 + $0x54] sm:$0xf]
        %v1318 = vld [vmem:[#allocation10 + $0x58] sm:$0xf]
        %v1319 = vld [vmem:[#allocation10 + $0x5c] sm:$0xf]
        %v1320 = vld [vmem:[#allocation10 + $0x60] sm:$0xf]
        %v1321 = vld [vmem:[#allocation10 + $0x64] sm:$0xf]
        %v1322 = vld [vmem:[#allocation10 + $0x68] sm:$0xf]
        %v1323 = vld [vmem:[#allocation10 + $0x6c] sm:$0xf]
        %v1324 = vld [vmem:[#allocation10 + $0x70] sm:$0xf]
        %v1325 = vld [vmem:[#allocation10 + $0x74] sm:$0xf]
        %v1326 = vld [vmem:[#allocation10 + $0x78] sm:$0xf]
        %v1327 = vld [vmem:[#allocation10 + $0x7c] sm:$0xf]
        %v1328 = vld [vmem:[#allocation10 + $0x80] sm:$0xf]
        %v1329 = vld [vmem:[#allocation10 + $0x84] sm:$0xf]
        %v1330 = vld [vmem:[#allocation10 + $0x88] sm:$0xf]
        %v1331 = vld [vmem:[#allocation10 + $0x8c] sm:$0xf]
        %v1332 = vld [vmem:[#allocation10 + $0x90] sm:$0xf]
        %v1333 = vld [vmem:[#allocation10 + $0x94] sm:$0xf]
        %v1334 = vld [vmem:[#allocation10 + $0x98] sm:$0xf]
        %v1335 = vld [vmem:[#allocation10 + $0x9c] sm:$0xf]
        %v1336 = vld [vmem:[#allocation10 + $0xa0] sm:$0xf]
        %v1337 = vld [vmem:[#allocation10 + $0xa4] sm:$0xf]
        %v1338 = vld [vmem:[#allocation10 + $0xa8] sm:$0xf]
        %v1339 = vld [vmem:[#allocation10 + $0xac] sm:$0xf]
        %v1340 = vld [vmem:[#allocation10 + $0xb0] sm:$0xf]
        %v1341 = vld [vmem:[#allocation10 + $0xb4] sm:$0xf]
        %v1342 = vld [vmem:[#allocation10 + $0xb8] sm:$0xf]
        %v1343 = vld [vmem:[#allocation10 + $0xbc] sm:$0xf]
        %v1344 = vld [vmem:[#allocation10 + $0xc0] sm:$0xf]
        %v1345 = vld [vmem:[#allocation10 + $0xc4] sm:$0xf]
        %v1346 = vld [vmem:[#allocation10 + $0xc8] sm:$0xf]
        %v1347 = vld [vmem:[#allocation10 + $0xcc] sm:$0xf]
        %v1348 = vld [vmem:[#allocation10 + $0xd0] sm:$0xf]
        %v1349 = vld [vmem:[#allocation10 + $0xd4] sm:$0xf]
        %v1350 = vld [vmem:[#allocation10 + $0xd8] sm:$0xf]
        %v1351 = vld [vmem:[#allocation10 + $0xdc] sm:$0xf]
        %v1352 = vld [vmem:[#allocation10 + $0xe0] sm:$0xf]
        %v1353 = vld [vmem:[#allocation10 + $0xe4] sm:$0xf]
        %v1354 = vld [vmem:[#allocation10 + $0xe8] sm:$0xf]
        %v1355 = vld [vmem:[#allocation10 + $0xec] sm:$0xf]
        %v1356 = vld [vmem:[#allocation10 + $0xf0] sm:$0xf]
        %v1357 = vld [vmem:[#allocation10 + $0xf4] sm:$0xf]
        %v1358 = vld [vmem:[#allocation10 + $0xf8] sm:$0xf]
        %v1359 = vld [vmem:[#allocation10 + $0xfc] sm:$0xf]
        %v1360 = vld [vmem:[#allocation10 + $0x100] sm:$0xf]
        %v1361 = vld [vmem:[#allocation10 + $0x104] sm:$0xf]
        %v1362 = vld [vmem:[#allocation10 + $0x108] sm:$0xf]
        %v1363 = vld [vmem:[#allocation10 + $0x10c] sm:$0xf]
        %v1364 = vld [vmem:[#allocation10 + $0x110] sm:$0xf]
        %v1365 = vld [vmem:[#allocation10 + $0x114] sm:$0xf]
        %v1366 = vld [vmem:[#allocation10 + $0x118] sm:$0xf]
        %v1367 = vld [vmem:[#allocation10 + $0x11c] sm:$0xf]
        %v1368 = vld [vmem:[#allocation10 + $0x120] sm:$0xf]
        %v1369 = vld [vmem:[#allocation10 + $0x124] sm:$0xf]
        %v1370 = vld [vmem:[#allocation10 + $0x128] sm:$0xf]
        %v1371 = vld [vmem:[#allocation10 + $0x12c] sm:$0xf]
        %v1372 = vld [vmem:[#allocation10 + $0x130] sm:$0xf]
        %v1373 = vld [vmem:[#allocation10 + $0x134] sm:$0xf]
        %v1374 = vld [vmem:[#allocation10 + $0x138] sm:$0xf]
        %v1375 = vld [vmem:[#allocation10 + $0x13c] sm:$0xf]
        %v1376 = vld [vmem:[%s8] sm:$0x1]
        %v1378 = vperm.slane %v1376, 0
        %v1460 = vunpack.c.l.b16 %v1296
        %v1461 = vunpack.c.l.b16 %v1297
        %v1462 = vunpack.c.l.b16 %v1298
        %v1463 = vunpack.c.l.b16 %v1299
        %v1464 = vunpack.c.l.b16 %v1300
        %v1465 = vunpack.c.l.b16 %v1301
        %v1466 = vunpack.c.l.b16 %v1302
        %v1467 = vunpack.c.l.b16 %v1303
        %v1468 = vunpack.c.l.b16 %v1304
        %v1469 = vunpack.c.l.b16 %v1305
        %v1470 = vunpack.c.l.b16 %v1306
        %v1471 = vunpack.c.l.b16 %v1307
        %v1472 = vunpack.c.l.b16 %v1308
        %v1473 = vunpack.c.l.b16 %v1309
        %v1474 = vunpack.c.l.b16 %v1310
        %v1475 = vunpack.c.l.b16 %v1311
        %v1476 = vunpack.c.l.b16 %v1312
        %v1477 = vunpack.c.l.b16 %v1313
        %v1478 = vunpack.c.l.b16 %v1314
        %v1479 = vunpack.c.l.b16 %v1315
        %v1480 = vunpack.c.l.b16 %v1316
        %v1481 = vunpack.c.l.b16 %v1317
        %v1482 = vunpack.c.l.b16 %v1318
        %v1483 = vunpack.c.l.b16 %v1319
        %v1484 = vunpack.c.l.b16 %v1320
        %v1485 = vunpack.c.l.b16 %v1321
        %v1486 = vunpack.c.l.b16 %v1322
        %v1487 = vunpack.c.l.b16 %v1323
        %v1488 = vunpack.c.l.b16 %v1324
        %v1489 = vunpack.c.l.b16 %v1325
        %v1490 = vunpack.c.l.b16 %v1326
        %v1491 = vunpack.c.l.b16 %v1327
        %v1492 = vunpack.c.l.b16 %v1328
        %v1493 = vunpack.c.l.b16 %v1329
        %v1494 = vunpack.c.l.b16 %v1330
        %v1495 = vunpack.c.l.b16 %v1331
        %v1496 = vunpack.c.l.b16 %v1332
        %v1497 = vunpack.c.l.b16 %v1333
        %v1498 = vunpack.c.l.b16 %v1334
        %v1499 = vunpack.c.l.b16 %v1335
        %v1500 = vunpack.c.l.b16 %v1336
        %v1501 = vunpack.c.l.b16 %v1337
        %v1502 = vunpack.c.l.b16 %v1338
        %v1503 = vunpack.c.l.b16 %v1339
        %v1504 = vunpack.c.l.b16 %v1340
        %v1505 = vunpack.c.l.b16 %v1341
        %v1506 = vunpack.c.l.b16 %v1342
        %v1507 = vunpack.c.l.b16 %v1343
        %v1508 = vunpack.c.l.b16 %v1344
        %v1509 = vunpack.c.l.b16 %v1345
        %v1510 = vunpack.c.l.b16 %v1346
        %v1511 = vunpack.c.l.b16 %v1347
        %v1512 = vunpack.c.l.b16 %v1348
        %v1513 = vunpack.c.l.b16 %v1349
        %v1514 = vunpack.c.l.b16 %v1350
        %v1515 = vunpack.c.l.b16 %v1351
        %v1516 = vunpack.c.l.b16 %v1352
        %v1517 = vunpack.c.l.b16 %v1353
        %v1518 = vunpack.c.l.b16 %v1354
        %v1519 = vunpack.c.l.b16 %v1355
        %v1520 = vunpack.c.l.b16 %v1356
        %v1521 = vunpack.c.l.b16 %v1357
        %v1522 = vunpack.c.l.b16 %v1358
        %v1523 = vunpack.c.l.b16 %v1359
        %v1524 = vunpack.c.l.b16 %v1360
        %v1525 = vunpack.c.l.b16 %v1361
        %v1526 = vunpack.c.l.b16 %v1362
        %v1527 = vunpack.c.l.b16 %v1363
        %v1528 = vunpack.c.l.b16 %v1364
        %v1529 = vunpack.c.l.b16 %v1365
        %v1530 = vunpack.c.l.b16 %v1366
        %v1531 = vunpack.c.l.b16 %v1367
        %v1532 = vunpack.c.l.b16 %v1368
        %v1533 = vunpack.c.l.b16 %v1369
        %v1534 = vunpack.c.l.b16 %v1370
        %v1535 = vunpack.c.l.b16 %v1371
        %v1536 = vunpack.c.l.b16 %v1372
        %v1537 = vunpack.c.l.b16 %v1373
        %v1538 = vunpack.c.l.b16 %v1374
        %v1539 = vunpack.c.l.b16 %v1375
        %v1540 = vpack.c.b16 %v1461, %v1460
        %v1541 = vpack.c.b16 %v1463, %v1462
        %v1542 = vpack.c.b16 %v1465, %v1464
        %v1543 = vpack.c.b16 %v1467, %v1466
        %v1544 = vpack.c.b16 %v1469, %v1468
        %v1545 = vpack.c.b16 %v1471, %v1470
        %v1546 = vpack.c.b16 %v1473, %v1472
        %v1547 = vpack.c.b16 %v1475, %v1474
        %v1548 = vpack.c.b16 %v1477, %v1476
        %v1549 = vpack.c.b16 %v1479, %v1478
        %v1550 = vpack.c.b16 %v1481, %v1480
        %v1551 = vpack.c.b16 %v1483, %v1482
        %v1552 = vpack.c.b16 %v1485, %v1484
        %v1553 = vpack.c.b16 %v1487, %v1486
        %v1554 = vpack.c.b16 %v1489, %v1488
        %v1555 = vpack.c.b16 %v1491, %v1490
        %v1556 = vpack.c.b16 %v1493, %v1492
        %v1557 = vpack.c.b16 %v1495, %v1494
        %v1558 = vpack.c.b16 %v1497, %v1496
        %v1559 = vpack.c.b16 %v1499, %v1498
        %v1560 = vpack.c.b16 %v1501, %v1500
        %v1561 = vpack.c.b16 %v1503, %v1502
        %v1562 = vpack.c.b16 %v1505, %v1504
        %v1563 = vpack.c.b16 %v1507, %v1506
        %v1564 = vpack.c.b16 %v1509, %v1508
        %v1565 = vpack.c.b16 %v1511, %v1510
        %v1566 = vpack.c.b16 %v1513, %v1512
        %v1567 = vpack.c.b16 %v1515, %v1514
        %v1568 = vpack.c.b16 %v1517, %v1516
        %v1569 = vpack.c.b16 %v1519, %v1518
        %v1570 = vpack.c.b16 %v1521, %v1520
        %v1571 = vpack.c.b16 %v1523, %v1522
        %v1572 = vpack.c.b16 %v1525, %v1524
        %v1573 = vpack.c.b16 %v1527, %v1526
        %v1574 = vpack.c.b16 %v1529, %v1528
        %v1575 = vpack.c.b16 %v1531, %v1530
        %v1576 = vpack.c.b16 %v1533, %v1532
        %v1577 = vpack.c.b16 %v1535, %v1534
        %v1578 = vpack.c.b16 %v1537, %v1536
        %v1579 = vpack.c.b16 %v1539, %v1538
        %1620 = vmatpush.bf16.msra.mxu0 %v1547
        %1621 = vmatpush.bf16.msra.mxu0 %v1546
        %1622 = vmatpush.bf16.msra.mxu0 %v1545
        %1623 = vmatpush.bf16.msra.mxu0 %v1544
        %1624 = vmatpush.bf16.msra.mxu0 %v1543
        %1625 = vmatpush.bf16.msra.mxu0 %v1542
        %1626 = vmatpush.bf16.msra.mxu0 %v1541
        %1627 = vmatpush.bf16.msra.mxu0 %v1540
        %1628 = vmatmul.bf16.gmra.mxu0 %v715
        %v1629 = vpop.f32.mrf.mxu0
        %v1630 = vadd.f32 %v1378, %v1629
        %v1631 = vpop.f32.mrf.mxu0
        %v1632 = vadd.f32 %v1378, %v1631
        %1633 = vdwg.mxu0
        %1634 = vmatpush.bf16.msra.mxu0 %v1555
        %1635 = vmatpush.bf16.msra.mxu0 %v1554
        %1636 = vmatpush.bf16.msra.mxu0 %v1553
        %1637 = vmatpush.bf16.msra.mxu0 %v1552
        %1638 = vmatpush.bf16.msra.mxu0 %v1551
        %1639 = vmatpush.bf16.msra.mxu0 %v1550
        %1640 = vmatpush.bf16.msra.mxu0 %v1549
        %1641 = vmatpush.bf16.msra.mxu0 %v1548
        %1642 = vmatmul.bf16.gmra.mxu0 %v712
        %v1643 = vpop.f32.mrf.mxu0
        %v1644 = vadd.f32 %v1630, %v1643
        %v1645 = vpop.f32.mrf.mxu0
        %v1646 = vadd.f32 %v1632, %v1645
        %1647 = vdwg.mxu0
        %1648 = vmatpush.bf16.msra.mxu0 %v1563
        %1649 = vmatpush.bf16.msra.mxu0 %v1562
        %1650 = vmatpush.bf16.msra.mxu0 %v1561
        %1651 = vmatpush.bf16.msra.mxu0 %v1560
        %1652 = vmatpush.bf16.msra.mxu0 %v1559
        %1653 = vmatpush.bf16.msra.mxu0 %v1558
        %1654 = vmatpush.bf16.msra.mxu0 %v1557
        %1655 = vmatpush.bf16.msra.mxu0 %v1556
        %1656 = vmatmul.bf16.gmra.mxu0 %v713
        %v1657 = vpop.f32.mrf.mxu0
        %v1658 = vadd.f32 %v1644, %v1657
        %v1659 = vpop.f32.mrf.mxu0
        %v1660 = vadd.f32 %v1646, %v1659
        %1661 = vdwg.mxu0
        %1662 = vmatpush.bf16.msra.mxu0 %v1571
        %1663 = vmatpush.bf16.msra.mxu0 %v1570
        %1664 = vmatpush.bf16.msra.mxu0 %v1569
        %1665 = vmatpush.bf16.msra.mxu0 %v1568
        %1666 = vmatpush.bf16.msra.mxu0 %v1567
        %1667 = vmatpush.bf16.msra.mxu0 %v1566
        %1668 = vmatpush.bf16.msra.mxu0 %v1565
        %1669 = vmatpush.bf16.msra.mxu0 %v1564
        %1670 = vmatmul.bf16.gmra.mxu0 %v714
        %v1671 = vpop.f32.mrf.mxu0
        %v1672 = vadd.f32 %v1658, %v1671
        %v1673 = vpop.f32.mrf.mxu0
        %v1674 = vadd.f32 %v1660, %v1673
        %1675 = vdwg.mxu0
        %1676 = vmatpush.bf16.msra.mxu0 %v1579
        %1677 = vmatpush.bf16.msra.mxu0 %v1578
        %1678 = vmatpush.bf16.msra.mxu0 %v1577
        %1679 = vmatpush.bf16.msra.mxu0 %v1576
        %1680 = vmatpush.bf16.msra.mxu0 %v1575
        %1681 = vmatpush.bf16.msra.mxu0 %v1574
        %1682 = vmatpush.bf16.msra.mxu0 %v1573
        %1683 = vmatpush.bf16.msra.mxu0 %v1572
        %1684 = vmatmul.bf16.gmra.mxu0 %v716
        %v1685 = vpop.f32.mrf.mxu0
        %v1686 = vadd.f32 %v1672, %v1685
        %v1687 = vpop.f32.mrf.mxu0
        %v1688 = vadd.f32 %v1674, %v1687
        %1689 = vdwg.mxu0
        %v1690 = vmax.f32 %v1686, 0.0
        %v1691 = vmax.f32 %v1688, 0.0
        %v1692 = vrot.slane %v1690, 6
        %v1693 = vrot.slane %v1691, 6
        %v1694 = vsel %vm686, %v1692, %v1693
        %v1695 = vsel %vm686, %v1693, %v1692
        %v1696 = vsel %vm664, %v1695, 0.0
        %v1697 = vsel %vm665, %v1694, 0.0
        %v1698 = vrot.slane %v1690, 7
        %v1699 = vrot.slane %v1691, 7
        %v1700 = vsel %vm693, %v1698, %v1699
        %v1701 = vsel %vm693, %v1699, %v1698
        %v1702 = vsel %vm670, %v1701, 0.0
        %v1703 = vsel %vm671, %v1700, 0.0
        %v1704 = vrot.slane %v1690, 1
        %v1705 = vrot.slane %v1691, 1
        %v1706 = vsel %vm700, %v1704, %v1705
        %v1707 = vsel %vm700, %v1705, %v1704
        %v1708 = vsel %vm676, %v1706, 0.0
        %v1709 = vsel %vm677, %v1707, 0.0
        %v1710 = vrot.slane %v1690, 2
        %v1711 = vrot.slane %v1691, 2
        %v1712 = vsel %vm707, %v1710, %v1711
        %v1713 = vsel %vm707, %v1711, %v1710
        %v1714 = vsel %vm682, %v1712, 0.0
        %v1715 = vsel %vm683, %v1713, 0.0
        %v1716 = vpack.c.bf16 %v1697, %v1696
        %v1717 = vpack.c.bf16 %v1703, %v1702
        %v1718 = vpack.c.bf16 %v1691, %v1690
        %v1719 = vpack.c.bf16 %v1709, %v1708
        %v1720 = vpack.c.bf16 %v1715, %v1714
        %v1721 = vld [vmem:[#allocation11] sm:$0xf]
        %v1722 = vld [vmem:[#allocation11 + $0x4] sm:$0xf]
        %v1723 = vld [vmem:[#allocation11 + $0x8] sm:$0xf]
        %v1724 = vld [vmem:[#allocation11 + $0xc] sm:$0xf]
        %v1725 = vld [vmem:[#allocation11 + $0x10] sm:$0xf]
        %v1726 = vld [vmem:[#allocation11 + $0x14] sm:$0xf]
        %v1727 = vld [vmem:[#allocation11 + $0x18] sm:$0xf]
        %v1728 = vld [vmem:[#allocation11 + $0x1c] sm:$0xf]
        %v1729 = vld [vmem:[#allocation11 + $0x20] sm:$0xf]
        %v1730 = vld [vmem:[#allocation11 + $0x24] sm:$0xf]
        %v1731 = vld [vmem:[#allocation11 + $0x28] sm:$0xf]
        %v1732 = vld [vmem:[#allocation11 + $0x2c] sm:$0xf]
        %v1733 = vld [vmem:[#allocation11 + $0x30] sm:$0xf]
        %v1734 = vld [vmem:[#allocation11 + $0x34] sm:$0xf]
        %v1735 = vld [vmem:[#allocation11 + $0x38] sm:$0xf]
        %v1736 = vld [vmem:[#allocation11 + $0x3c] sm:$0xf]
        %v1737 = vld [vmem:[#allocation11 + $0x40] sm:$0xf]
        %v1738 = vld [vmem:[#allocation11 + $0x44] sm:$0xf]
        %v1739 = vld [vmem:[#allocation11 + $0x48] sm:$0xf]
        %v1740 = vld [vmem:[#allocation11 + $0x4c] sm:$0xf]
        %v1741 = vld [vmem:[#allocation11 + $0x50] sm:$0xf]
        %v1742 = vld [vmem:[#allocation11 + $0x54] sm:$0xf]
        %v1743 = vld [vmem:[#allocation11 + $0x58] sm:$0xf]
        %v1744 = vld [vmem:[#allocation11 + $0x5c] sm:$0xf]
        %v1745 = vld [vmem:[#allocation11 + $0x60] sm:$0xf]
        %v1746 = vld [vmem:[#allocation11 + $0x64] sm:$0xf]
        %v1747 = vld [vmem:[#allocation11 + $0x68] sm:$0xf]
        %v1748 = vld [vmem:[#allocation11 + $0x6c] sm:$0xf]
        %v1749 = vld [vmem:[#allocation11 + $0x70] sm:$0xf]
        %v1750 = vld [vmem:[#allocation11 + $0x74] sm:$0xf]
        %v1751 = vld [vmem:[#allocation11 + $0x78] sm:$0xf]
        %v1752 = vld [vmem:[#allocation11 + $0x7c] sm:$0xf]
        %v1753 = vld [vmem:[#allocation11 + $0x80] sm:$0xf]
        %v1754 = vld [vmem:[#allocation11 + $0x84] sm:$0xf]
        %v1755 = vld [vmem:[#allocation11 + $0x88] sm:$0xf]
        %v1756 = vld [vmem:[#allocation11 + $0x8c] sm:$0xf]
        %v1757 = vld [vmem:[#allocation11 + $0x90] sm:$0xf]
        %v1758 = vld [vmem:[#allocation11 + $0x94] sm:$0xf]
        %v1759 = vld [vmem:[#allocation11 + $0x98] sm:$0xf]
        %v1760 = vld [vmem:[#allocation11 + $0x9c] sm:$0xf]
        %v1761 = vld [vmem:[#allocation11 + $0xa0] sm:$0xf]
        %v1762 = vld [vmem:[#allocation11 + $0xa4] sm:$0xf]
        %v1763 = vld [vmem:[#allocation11 + $0xa8] sm:$0xf]
        %v1764 = vld [vmem:[#allocation11 + $0xac] sm:$0xf]
        %v1765 = vld [vmem:[#allocation11 + $0xb0] sm:$0xf]
        %v1766 = vld [vmem:[#allocation11 + $0xb4] sm:$0xf]
        %v1767 = vld [vmem:[#allocation11 + $0xb8] sm:$0xf]
        %v1768 = vld [vmem:[#allocation11 + $0xbc] sm:$0xf]
        %v1769 = vld [vmem:[#allocation11 + $0xc0] sm:$0xf]
        %v1770 = vld [vmem:[#allocation11 + $0xc4] sm:$0xf]
        %v1771 = vld [vmem:[#allocation11 + $0xc8] sm:$0xf]
        %v1772 = vld [vmem:[#allocation11 + $0xcc] sm:$0xf]
        %v1773 = vld [vmem:[#allocation11 + $0xd0] sm:$0xf]
        %v1774 = vld [vmem:[#allocation11 + $0xd4] sm:$0xf]
        %v1775 = vld [vmem:[#allocation11 + $0xd8] sm:$0xf]
        %v1776 = vld [vmem:[#allocation11 + $0xdc] sm:$0xf]
        %v1777 = vld [vmem:[#allocation11 + $0xe0] sm:$0xf]
        %v1778 = vld [vmem:[#allocation11 + $0xe4] sm:$0xf]
        %v1779 = vld [vmem:[#allocation11 + $0xe8] sm:$0xf]
        %v1780 = vld [vmem:[#allocation11 + $0xec] sm:$0xf]
        %v1781 = vld [vmem:[#allocation11 + $0xf0] sm:$0xf]
        %v1782 = vld [vmem:[#allocation11 + $0xf4] sm:$0xf]
        %v1783 = vld [vmem:[#allocation11 + $0xf8] sm:$0xf]
        %v1784 = vld [vmem:[#allocation11 + $0xfc] sm:$0xf]
        %v1785 = vld [vmem:[#allocation11 + $0x100] sm:$0xf]
        %v1786 = vld [vmem:[#allocation11 + $0x104] sm:$0xf]
        %v1787 = vld [vmem:[#allocation11 + $0x108] sm:$0xf]
        %v1788 = vld [vmem:[#allocation11 + $0x10c] sm:$0xf]
        %v1789 = vld [vmem:[#allocation11 + $0x110] sm:$0xf]
        %v1790 = vld [vmem:[#allocation11 + $0x114] sm:$0xf]
        %v1791 = vld [vmem:[#allocation11 + $0x118] sm:$0xf]
        %v1792 = vld [vmem:[#allocation11 + $0x11c] sm:$0xf]
        %v1793 = vld [vmem:[#allocation11 + $0x120] sm:$0xf]
        %v1794 = vld [vmem:[#allocation11 + $0x124] sm:$0xf]
        %v1795 = vld [vmem:[#allocation11 + $0x128] sm:$0xf]
        %v1796 = vld [vmem:[#allocation11 + $0x12c] sm:$0xf]
        %v1797 = vld [vmem:[#allocation11 + $0x130] sm:$0xf]
        %v1798 = vld [vmem:[#allocation11 + $0x134] sm:$0xf]
        %v1799 = vld [vmem:[#allocation11 + $0x138] sm:$0xf]
        %v1800 = vld [vmem:[#allocation11 + $0x13c] sm:$0xf]
        %v1801 = vld [vmem:[%s10] sm:$0x1]
        %v1803 = vperm.slane %v1801, 0
        %v1885 = vunpack.c.l.b16 %v1721
        %v1886 = vunpack.c.l.b16 %v1722
        %v1887 = vunpack.c.l.b16 %v1723
        %v1888 = vunpack.c.l.b16 %v1724
        %v1889 = vunpack.c.l.b16 %v1725
        %v1890 = vunpack.c.l.b16 %v1726
        %v1891 = vunpack.c.l.b16 %v1727
        %v1892 = vunpack.c.l.b16 %v1728
        %v1893 = vunpack.c.l.b16 %v1729
        %v1894 = vunpack.c.l.b16 %v1730
        %v1895 = vunpack.c.l.b16 %v1731
        %v1896 = vunpack.c.l.b16 %v1732
        %v1897 = vunpack.c.l.b16 %v1733
        %v1898 = vunpack.c.l.b16 %v1734
        %v1899 = vunpack.c.l.b16 %v1735
        %v1900 = vunpack.c.l.b16 %v1736
        %v1901 = vunpack.c.l.b16 %v1737
        %v1902 = vunpack.c.l.b16 %v1738
        %v1903 = vunpack.c.l.b16 %v1739
        %v1904 = vunpack.c.l.b16 %v1740
        %v1905 = vunpack.c.l.b16 %v1741
        %v1906 = vunpack.c.l.b16 %v1742
        %v1907 = vunpack.c.l.b16 %v1743
        %v1908 = vunpack.c.l.b16 %v1744
        %v1909 = vunpack.c.l.b16 %v1745
        %v1910 = vunpack.c.l.b16 %v1746
        %v1911 = vunpack.c.l.b16 %v1747
        %v1912 = vunpack.c.l.b16 %v1748
        %v1913 = vunpack.c.l.b16 %v1749
        %v1914 = vunpack.c.l.b16 %v1750
        %v1915 = vunpack.c.l.b16 %v1751
        %v1916 = vunpack.c.l.b16 %v1752
        %v1917 = vunpack.c.l.b16 %v1753
        %v1918 = vunpack.c.l.b16 %v1754
        %v1919 = vunpack.c.l.b16 %v1755
        %v1920 = vunpack.c.l.b16 %v1756
        %v1921 = vunpack.c.l.b16 %v1757
        %v1922 = vunpack.c.l.b16 %v1758
        %v1923 = vunpack.c.l.b16 %v1759
        %v1924 = vunpack.c.l.b16 %v1760
        %v1925 = vunpack.c.l.b16 %v1761
        %v1926 = vunpack.c.l.b16 %v1762
        %v1927 = vunpack.c.l.b16 %v1763
        %v1928 = vunpack.c.l.b16 %v1764
        %v1929 = vunpack.c.l.b16 %v1765
        %v1930 = vunpack.c.l.b16 %v1766
        %v1931 = vunpack.c.l.b16 %v1767
        %v1932 = vunpack.c.l.b16 %v1768
        %v1933 = vunpack.c.l.b16 %v1769
        %v1934 = vunpack.c.l.b16 %v1770
        %v1935 = vunpack.c.l.b16 %v1771
        %v1936 = vunpack.c.l.b16 %v1772
        %v1937 = vunpack.c.l.b16 %v1773
        %v1938 = vunpack.c.l.b16 %v1774
        %v1939 = vunpack.c.l.b16 %v1775
        %v1940 = vunpack.c.l.b16 %v1776
        %v1941 = vunpack.c.l.b16 %v1777
        %v1942 = vunpack.c.l.b16 %v1778
        %v1943 = vunpack.c.l.b16 %v1779
        %v1944 = vunpack.c.l.b16 %v1780
        %v1945 = vunpack.c.l.b16 %v1781
        %v1946 = vunpack.c.l.b16 %v1782
        %v1947 = vunpack.c.l.b16 %v1783
        %v1948 = vunpack.c.l.b16 %v1784
        %v1949 = vunpack.c.l.b16 %v1785
        %v1950 = vunpack.c.l.b16 %v1786
        %v1951 = vunpack.c.l.b16 %v1787
        %v1952 = vunpack.c.l.b16 %v1788
        %v1953 = vunpack.c.l.b16 %v1789
        %v1954 = vunpack.c.l.b16 %v1790
        %v1955 = vunpack.c.l.b16 %v1791
        %v1956 = vunpack.c.l.b16 %v1792
        %v1957 = vunpack.c.l.b16 %v1793
        %v1958 = vunpack.c.l.b16 %v1794
        %v1959 = vunpack.c.l.b16 %v1795
        %v1960 = vunpack.c.l.b16 %v1796
        %v1961 = vunpack.c.l.b16 %v1797
        %v1962 = vunpack.c.l.b16 %v1798
        %v1963 = vunpack.c.l.b16 %v1799
        %v1964 = vunpack.c.l.b16 %v1800
        %v1965 = vpack.c.b16 %v1886, %v1885
        %v1966 = vpack.c.b16 %v1888, %v1887
        %v1967 = vpack.c.b16 %v1890, %v1889
        %v1968 = vpack.c.b16 %v1892, %v1891
        %v1969 = vpack.c.b16 %v1894, %v1893
        %v1970 = vpack.c.b16 %v1896, %v1895
        %v1971 = vpack.c.b16 %v1898, %v1897
        %v1972 = vpack.c.b16 %v1900, %v1899
        %v1973 = vpack.c.b16 %v1902, %v1901
        %v1974 = vpack.c.b16 %v1904, %v1903
        %v1975 = vpack.c.b16 %v1906, %v1905
        %v1976 = vpack.c.b16 %v1908, %v1907
        %v1977 = vpack.c.b16 %v1910, %v1909
        %v1978 = vpack.c.b16 %v1912, %v1911
        %v1979 = vpack.c.b16 %v1914, %v1913
        %v1980 = vpack.c.b16 %v1916, %v1915
        %v1981 = vpack.c.b16 %v1918, %v1917
        %v1982 = vpack.c.b16 %v1920, %v1919
        %v1983 = vpack.c.b16 %v1922, %v1921
        %v1984 = vpack.c.b16 %v1924, %v1923
        %v1985 = vpack.c.b16 %v1926, %v1925
        %v1986 = vpack.c.b16 %v1928, %v1927
        %v1987 = vpack.c.b16 %v1930, %v1929
        %v1988 = vpack.c.b16 %v1932, %v1931
        %v1989 = vpack.c.b16 %v1934, %v1933
        %v1990 = vpack.c.b16 %v1936, %v1935
        %v1991 = vpack.c.b16 %v1938, %v1937
        %v1992 = vpack.c.b16 %v1940, %v1939
        %v1993 = vpack.c.b16 %v1942, %v1941
        %v1994 = vpack.c.b16 %v1944, %v1943
        %v1995 = vpack.c.b16 %v1946, %v1945
        %v1996 = vpack.c.b16 %v1948, %v1947
        %v1997 = vpack.c.b16 %v1950, %v1949
        %v1998 = vpack.c.b16 %v1952, %v1951
        %v1999 = vpack.c.b16 %v1954, %v1953
        %v2000 = vpack.c.b16 %v1956, %v1955
        %v2001 = vpack.c.b16 %v1958, %v1957
        %v2002 = vpack.c.b16 %v1960, %v1959
        %v2003 = vpack.c.b16 %v1962, %v1961
        %v2004 = vpack.c.b16 %v1964, %v1963
        %2045 = vmatpush.bf16.msra.mxu0 %v1972
        %2046 = vmatpush.bf16.msra.mxu0 %v1971
        %2047 = vmatpush.bf16.msra.mxu0 %v1970
        %2048 = vmatpush.bf16.msra.mxu0 %v1969
        %2049 = vmatpush.bf16.msra.mxu0 %v1968
        %2050 = vmatpush.bf16.msra.mxu0 %v1967
        %2051 = vmatpush.bf16.msra.mxu0 %v1966
        %2052 = vmatpush.bf16.msra.mxu0 %v1965
        %2053 = vmatmul.bf16.gmra.mxu0 %v1716
        %v2054 = vpop.f32.mrf.mxu0
        %v2055 = vadd.f32 %v1803, %v2054
        %v2056 = vpop.f32.mrf.mxu0
        %v2057 = vadd.f32 %v1803, %v2056
        %2058 = vdwg.mxu0
        %2059 = vmatpush.bf16.msra.mxu0 %v1980
        %2060 = vmatpush.bf16.msra.mxu0 %v1979
        %2061 = vmatpush.bf16.msra.mxu0 %v1978
        %2062 = vmatpush.bf16.msra.mxu0 %v1977
        %2063 = vmatpush.bf16.msra.mxu0 %v1976
        %2064 = vmatpush.bf16.msra.mxu0 %v1975
        %2065 = vmatpush.bf16.msra.mxu0 %v1974
        %2066 = vmatpush.bf16.msra.mxu0 %v1973
        %2067 = vmatmul.bf16.gmra.mxu0 %v1717
        %v2068 = vpop.f32.mrf.mxu0
        %v2069 = vadd.f32 %v2055, %v2068
        %v2070 = vpop.f32.mrf.mxu0
        %v2071 = vadd.f32 %v2057, %v2070
        %2072 = vdwg.mxu0
        %2073 = vmatpush.bf16.msra.mxu0 %v1988
        %2074 = vmatpush.bf16.msra.mxu0 %v1987
        %2075 = vmatpush.bf16.msra.mxu0 %v1986
        %2076 = vmatpush.bf16.msra.mxu0 %v1985
        %2077 = vmatpush.bf16.msra.mxu0 %v1984
        %2078 = vmatpush.bf16.msra.mxu0 %v1983
        %2079 = vmatpush.bf16.msra.mxu0 %v1982
        %2080 = vmatpush.bf16.msra.mxu0 %v1981
        %2081 = vmatmul.bf16.gmra.mxu0 %v1718
        %v2082 = vpop.f32.mrf.mxu0
        %v2083 = vadd.f32 %v2069, %v2082
        %v2084 = vpop.f32.mrf.mxu0
        %v2085 = vadd.f32 %v2071, %v2084
        %2086 = vdwg.mxu0
        %2087 = vmatpush.bf16.msra.mxu0 %v1996
        %2088 = vmatpush.bf16.msra.mxu0 %v1995
        %2089 = vmatpush.bf16.msra.mxu0 %v1994
        %2090 = vmatpush.bf16.msra.mxu0 %v1993
        %2091 = vmatpush.bf16.msra.mxu0 %v1992
        %2092 = vmatpush.bf16.msra.mxu0 %v1991
        %2093 = vmatpush.bf16.msra.mxu0 %v1990
        %2094 = vmatpush.bf16.msra.mxu0 %v1989
        %2095 = vmatmul.bf16.gmra.mxu0 %v1719
        %v2096 = vpop.f32.mrf.mxu0
        %v2097 = vadd.f32 %v2083, %v2096
        %v2098 = vpop.f32.mrf.mxu0
        %v2099 = vadd.f32 %v2085, %v2098
        %2100 = vdwg.mxu0
        %2101 = vmatpush.bf16.msra.mxu0 %v2004
        %2102 = vmatpush.bf16.msra.mxu0 %v2003
        %2103 = vmatpush.bf16.msra.mxu0 %v2002
        %2104 = vmatpush.bf16.msra.mxu0 %v2001
        %2105 = vmatpush.bf16.msra.mxu0 %v2000
        %2106 = vmatpush.bf16.msra.mxu0 %v1999
        %2107 = vmatpush.bf16.msra.mxu0 %v1998
        %2108 = vmatpush.bf16.msra.mxu0 %v1997
        %2109 = vmatmul.bf16.gmra.mxu0 %v1720
        %v2110 = vpop.f32.mrf.mxu0
        %v2111 = vadd.f32 %v2097, %v2110
        %v2112 = vpop.f32.mrf.mxu0
        %v2113 = vadd.f32 %v2099, %v2112
        %2114 = vdwg.mxu0
        %v2115 = vmul.f32 %v2111, %v2111
        %v2116 = vmul.f32 %v2113, %v2113
        %v2117 = vadd.f32 %v799, %v1294
        %v2118 = vadd.f32 %v800, %v1295
        %v2119 = vadd.f32 %v2117, %v2115
        %v2120 = vadd.f32 %v2118, %v2116
        %v2121 = vrot.slane %v2119, 7
        %v2122 = vrot.slane %v2120, 7
        %v2123 = vsel %vm693, %v2121, %v2122
        %v2124 = vsel %vm693, %v2122, %v2121
        %v2125 = vsel %vm670, %v2124, 0.0
        %v2126 = vsel %vm671, %v2123, 0.0
        %v2127 = vrot.slane %v2119, 1
        %v2128 = vrot.slane %v2120, 1
        %v2129 = vsel %vm700, %v2127, %v2128
        %v2130 = vsel %vm700, %v2128, %v2127
        %v2131 = vsel %vm676, %v2129, 0.0
        %v2132 = vsel %vm677, %v2130, 0.0
        %v2133 = vpack.c.bf16 %v2126, %v2125
        %v2134 = vpack.c.bf16 %v2120, %v2119
        %v2135 = vpack.c.bf16 %v2132, %v2131
        %v2136 = vld [vmem:[#allocation13] sm:$0xf]
        %v2137 = vld [vmem:[#allocation13 + $0x4] sm:$0xf]
        %v2138 = vld [vmem:[#allocation13 + $0x8] sm:$0xf]
        %v2139 = vld [vmem:[#allocation13 + $0xc] sm:$0xf]
        %v2140 = vld [vmem:[#allocation13 + $0x10] sm:$0xf]
        %v2141 = vld [vmem:[#allocation13 + $0x14] sm:$0xf]
        %v2142 = vld [vmem:[#allocation13 + $0x18] sm:$0xf]
        %v2143 = vld [vmem:[#allocation13 + $0x1c] sm:$0xf]
        %v2144 = vld [vmem:[#allocation13 + $0x20] sm:$0xf]
        %v2145 = vld [vmem:[#allocation13 + $0x24] sm:$0xf]
        %v2146 = vld [vmem:[#allocation13 + $0x28] sm:$0xf]
        %v2147 = vld [vmem:[#allocation13 + $0x2c] sm:$0xf]
        %v2148 = vld [vmem:[#allocation13 + $0x30] sm:$0xf]
        %v2149 = vld [vmem:[#allocation13 + $0x34] sm:$0xf]
        %v2150 = vld [vmem:[#allocation13 + $0x38] sm:$0xf]
        %v2151 = vld [vmem:[#allocation13 + $0x3c] sm:$0xf]
        %v2152 = vld [vmem:[#allocation13 + $0x40] sm:$0xf]
        %v2153 = vld [vmem:[#allocation13 + $0x44] sm:$0xf]
        %v2154 = vld [vmem:[#allocation13 + $0x48] sm:$0xf]
        %v2155 = vld [vmem:[#allocation13 + $0x4c] sm:$0xf]
        %v2156 = vld [vmem:[#allocation13 + $0x50] sm:$0xf]
        %v2157 = vld [vmem:[#allocation13 + $0x54] sm:$0xf]
        %v2158 = vld [vmem:[#allocation13 + $0x58] sm:$0xf]
        %v2159 = vld [vmem:[#allocation13 + $0x5c] sm:$0xf]
        %v2160 = vld [vmem:[#allocation13 + $0x60] sm:$0xf]
        %v2161 = vld [vmem:[#allocation13 + $0x64] sm:$0xf]
        %v2162 = vld [vmem:[#allocation13 + $0x68] sm:$0xf]
        %v2163 = vld [vmem:[#allocation13 + $0x6c] sm:$0xf]
        %v2164 = vld [vmem:[#allocation13 + $0x70] sm:$0xf]
        %v2165 = vld [vmem:[#allocation13 + $0x74] sm:$0xf]
        %v2166 = vld [vmem:[#allocation13 + $0x78] sm:$0xf]
        %v2167 = vld [vmem:[#allocation13 + $0x7c] sm:$0xf]
        %v2168 = vld [vmem:[#allocation13 + $0x80] sm:$0xf]
        %v2169 = vld [vmem:[#allocation13 + $0x84] sm:$0xf]
        %v2170 = vld [vmem:[#allocation13 + $0x88] sm:$0xf]
        %v2171 = vld [vmem:[#allocation13 + $0x8c] sm:$0xf]
        %v2172 = vld [vmem:[#allocation13 + $0x90] sm:$0xf]
        %v2173 = vld [vmem:[#allocation13 + $0x94] sm:$0xf]
        %v2174 = vld [vmem:[#allocation13 + $0x98] sm:$0xf]
        %v2175 = vld [vmem:[#allocation13 + $0x9c] sm:$0xf]
        %v2176 = vld [vmem:[#allocation13 + $0xa0] sm:$0xf]
        %v2177 = vld [vmem:[#allocation13 + $0xa4] sm:$0xf]
        %v2178 = vld [vmem:[#allocation13 + $0xa8] sm:$0xf]
        %v2179 = vld [vmem:[#allocation13 + $0xac] sm:$0xf]
        %v2180 = vld [vmem:[#allocation13 + $0xb0] sm:$0xf]
        %v2181 = vld [vmem:[#allocation13 + $0xb4] sm:$0xf]
        %v2182 = vld [vmem:[#allocation13 + $0xb8] sm:$0xf]
        %v2183 = vld [vmem:[#allocation13 + $0xbc] sm:$0xf]
        %v2184 = vld [vmem:[%s12] sm:$0x1]
        %v2186 = vperm.slane %v2184, 0
        %v2236 = vunpack.c.l.b16 %v2136
        %v2237 = vunpack.c.l.b16 %v2137
        %v2238 = vunpack.c.l.b16 %v2138
        %v2239 = vunpack.c.l.b16 %v2139
        %v2240 = vunpack.c.l.b16 %v2140
        %v2241 = vunpack.c.l.b16 %v2141
        %v2242 = vunpack.c.l.b16 %v2142
        %v2243 = vunpack.c.l.b16 %v2143
        %v2244 = vunpack.c.l.b16 %v2144
        %v2245 = vunpack.c.l.b16 %v2145
        %v2246 = vunpack.c.l.b16 %v2146
        %v2247 = vunpack.c.l.b16 %v2147
        %v2248 = vunpack.c.l.b16 %v2148
        %v2249 = vunpack.c.l.b16 %v2149
        %v2250 = vunpack.c.l.b16 %v2150
        %v2251 = vunpack.c.l.b16 %v2151
        %v2252 = vunpack.c.l.b16 %v2152
        %v2253 = vunpack.c.l.b16 %v2153
        %v2254 = vunpack.c.l.b16 %v2154
        %v2255 = vunpack.c.l.b16 %v2155
        %v2256 = vunpack.c.l.b16 %v2156
        %v2257 = vunpack.c.l.b16 %v2157
        %v2258 = vunpack.c.l.b16 %v2158
        %v2259 = vunpack.c.l.b16 %v2159
        %v2260 = vunpack.c.l.b16 %v2160
        %v2261 = vunpack.c.l.b16 %v2161
        %v2262 = vunpack.c.l.b16 %v2162
        %v2263 = vunpack.c.l.b16 %v2163
        %v2264 = vunpack.c.l.b16 %v2164
        %v2265 = vunpack.c.l.b16 %v2165
        %v2266 = vunpack.c.l.b16 %v2166
        %v2267 = vunpack.c.l.b16 %v2167
        %v2268 = vunpack.c.l.b16 %v2168
        %v2269 = vunpack.c.l.b16 %v2169
        %v2270 = vunpack.c.l.b16 %v2170
        %v2271 = vunpack.c.l.b16 %v2171
        %v2272 = vunpack.c.l.b16 %v2172
        %v2273 = vunpack.c.l.b16 %v2173
        %v2274 = vunpack.c.l.b16 %v2174
        %v2275 = vunpack.c.l.b16 %v2175
        %v2276 = vunpack.c.l.b16 %v2176
        %v2277 = vunpack.c.l.b16 %v2177
        %v2278 = vunpack.c.l.b16 %v2178
        %v2279 = vunpack.c.l.b16 %v2179
        %v2280 = vunpack.c.l.b16 %v2180
        %v2281 = vunpack.c.l.b16 %v2181
        %v2282 = vunpack.c.l.b16 %v2182
        %v2283 = vunpack.c.l.b16 %v2183
        %v2284 = vpack.c.b16 %v2237, %v2236
        %v2285 = vpack.c.b16 %v2239, %v2238
        %v2286 = vpack.c.b16 %v2241, %v2240
        %v2287 = vpack.c.b16 %v2243, %v2242
        %v2288 = vpack.c.b16 %v2245, %v2244
        %v2289 = vpack.c.b16 %v2247, %v2246
        %v2290 = vpack.c.b16 %v2249, %v2248
        %v2291 = vpack.c.b16 %v2251, %v2250
        %v2292 = vpack.c.b16 %v2253, %v2252
        %v2293 = vpack.c.b16 %v2255, %v2254
        %v2294 = vpack.c.b16 %v2257, %v2256
        %v2295 = vpack.c.b16 %v2259, %v2258
        %v2296 = vpack.c.b16 %v2261, %v2260
        %v2297 = vpack.c.b16 %v2263, %v2262
        %v2298 = vpack.c.b16 %v2265, %v2264
        %v2299 = vpack.c.b16 %v2267, %v2266
        %v2300 = vpack.c.b16 %v2269, %v2268
        %v2301 = vpack.c.b16 %v2271, %v2270
        %v2302 = vpack.c.b16 %v2273, %v2272
        %v2303 = vpack.c.b16 %v2275, %v2274
        %v2304 = vpack.c.b16 %v2277, %v2276
        %v2305 = vpack.c.b16 %v2279, %v2278
        %v2306 = vpack.c.b16 %v2281, %v2280
        %v2307 = vpack.c.b16 %v2283, %v2282
        %2332 = vmatpush.bf16.msra.mxu0 %v2291
        %2333 = vmatpush.bf16.msra.mxu0 %v2290
        %2334 = vmatpush.bf16.msra.mxu0 %v2289
        %2335 = vmatpush.bf16.msra.mxu0 %v2288
        %2336 = vmatpush.bf16.msra.mxu0 %v2287
        %2337 = vmatpush.bf16.msra.mxu0 %v2286
        %2338 = vmatpush.bf16.msra.mxu0 %v2285
        %2339 = vmatpush.bf16.msra.mxu0 %v2284
        %2340 = vmatmul.bf16.gmra.mxu0 %v2133
        %v2341 = vpop.f32.mrf.mxu0
        %v2342 = vadd.f32 %v2186, %v2341
        %v2343 = vpop.f32.mrf.mxu0
        %v2344 = vadd.f32 %v2186, %v2343
        %2345 = vdwg.mxu0
        %2346 = vmatpush.bf16.msra.mxu0 %v2299
        %2347 = vmatpush.bf16.msra.mxu0 %v2298
        %2348 = vmatpush.bf16.msra.mxu0 %v2297
        %2349 = vmatpush.bf16.msra.mxu0 %v2296
        %2350 = vmatpush.bf16.msra.mxu0 %v2295
        %2351 = vmatpush.bf16.msra.mxu0 %v2294
        %2352 = vmatpush.bf16.msra.mxu0 %v2293
        %2353 = vmatpush.bf16.msra.mxu0 %v2292
        %2354 = vmatmul.bf16.gmra.mxu0 %v2134
        %v2355 = vpop.f32.mrf.mxu0
        %v2356 = vadd.f32 %v2342, %v2355
        %v2357 = vpop.f32.mrf.mxu0
        %v2358 = vadd.f32 %v2344, %v2357
        %2359 = vdwg.mxu0
        %2360 = vmatpush.bf16.msra.mxu0 %v2307
        %2361 = vmatpush.bf16.msra.mxu0 %v2306
        %2362 = vmatpush.bf16.msra.mxu0 %v2305
        %2363 = vmatpush.bf16.msra.mxu0 %v2304
        %2364 = vmatpush.bf16.msra.mxu0 %v2303
        %2365 = vmatpush.bf16.msra.mxu0 %v2302
        %2366 = vmatpush.bf16.msra.mxu0 %v2301
        %2367 = vmatpush.bf16.msra.mxu0 %v2300
        %2368 = vmatmul.bf16.gmra.mxu0 %v2135
        %v2369 = vpop.f32.mrf.mxu0
        %v2370 = vadd.f32 %v2356, %v2369
        %v2371 = vpop.f32.mrf.mxu0
        %v2372 = vadd.f32 %v2358, %v2371
        %2373 = vdwg.mxu0
        %v2374 = vmax.f32 %v2370, 0.0
        %v2375 = vmax.f32 %v2372, 0.0
        %v2376 = vsub.f32 0.0, %v631
        %v2377 = vsub.f32 0.0, %v632
        %v2378 = vmul.f32 %v2376, 1.442695
        %v2379 = vpow.pop %v2378
        %v2380 = vmul.f32 %v2377, 1.442695
        %v2381 = vpow.pop %v2380
        %v2382 = vadd.f32 %v2379, 1.0
        %v2383 = vadd.f32 %v2381, 1.0
        %v2384 = vrcp.pop %v2382
        %v2385 = vmul.f32 %v2382, %v2384
        %v2386 = vsub.f32 1.0, %v2385
        %v2387 = vmul.f32 %v2384, %v2386
        %v2388 = vadd.f32 %v2384, %v2387
        %vm2389 = vweird.f32 %v2382
        %vm2390 = vweird.f32 %v2384
        %vm2391 = vmor %vm2389, %vm2390
        %v2392 = vsel %vm2391, %v2384, %v2388
        %v2393 = vand.u32 2147483647, %v2382
        %vm2394 = vcmp.eq.f32.partialorder %v2393, 8.507059e+37
        %v2395 = vand.u32 %v2382, 2147483648
        %v2396 = vor.u32 1.1754944e-38, %v2395
        %v2397 = vsel %vm2394, %v2396, %v2392
        %v2398 = vmul.f32 1.0, %v2397
        %v2399 = vrcp.pop %v2383
        %v2400 = vmul.f32 %v2383, %v2399
        %v2401 = vsub.f32 1.0, %v2400
        %v2402 = vmul.f32 %v2399, %v2401
        %v2403 = vadd.f32 %v2399, %v2402
        %vm2404 = vweird.f32 %v2383
        %vm2405 = vweird.f32 %v2399
        %vm2406 = vmor %vm2404, %vm2405
        %v2407 = vsel %vm2406, %v2399, %v2403
        %v2408 = vand.u32 2147483647, %v2383
        %vm2409 = vcmp.eq.f32.partialorder %v2408, 8.507059e+37
        %v2410 = vand.u32 %v2383, 2147483648
        %v2411 = vor.u32 1.1754944e-38, %v2410
        %v2412 = vsel %vm2409, %v2411, %v2407
        %v2413 = vmul.f32 1.0, %v2412
        %v2414 = vmul.f32 %v2374, %v2398
        %v2415 = vmul.f32 %v2375, %v2413
        %v2416 = vadd.f32 %v2414, %v631
        %v2417 = vadd.f32 %v2415, %v632
        %v2418 = vpack.c.bf16 %v2417, %v2416
        %v2419 = vld [vmem:[#allocation14] sm:$0xf]
        %v2420 = vld [vmem:[#allocation14 + $0x4] sm:$0xf]
        %v2421 = vld [vmem:[#allocation14 + $0x8] sm:$0xf]
        %v2422 = vld [vmem:[#allocation14 + $0xc] sm:$0xf]
        %v2423 = vld [vmem:[#allocation14 + $0x10] sm:$0xf]
        %v2424 = vld [vmem:[#allocation14 + $0x14] sm:$0xf]
        %v2425 = vld [vmem:[#allocation14 + $0x18] sm:$0xf]
        %v2426 = vld [vmem:[#allocation14 + $0x1c] sm:$0xf]
        %v2427 = vld [vmem:[#allocation14 + $0x20] sm:$0xf]
        %v2428 = vld [vmem:[#allocation14 + $0x24] sm:$0xf]
        %v2429 = vld [vmem:[#allocation14 + $0x28] sm:$0xf]
        %v2430 = vld [vmem:[#allocation14 + $0x2c] sm:$0xf]
        %v2431 = vld [vmem:[#allocation14 + $0x30] sm:$0xf]
        %v2432 = vld [vmem:[#allocation14 + $0x34] sm:$0xf]
        %v2433 = vld [vmem:[#allocation14 + $0x38] sm:$0xf]
        %v2434 = vld [vmem:[#allocation14 + $0x3c] sm:$0xf]
        %v2435 = vld [vmem:[%s14] sm:$0x1]
        %v2437 = vperm.slane %v2435, 0
        %v2455 = vunpack.c.l.b16 %v2419
        %v2456 = vunpack.c.l.b16 %v2420
        %v2457 = vunpack.c.l.b16 %v2421
        %v2458 = vunpack.c.l.b16 %v2422
        %v2459 = vunpack.c.l.b16 %v2423
        %v2460 = vunpack.c.l.b16 %v2424
        %v2461 = vunpack.c.l.b16 %v2425
        %v2462 = vunpack.c.l.b16 %v2426
        %v2463 = vunpack.c.l.b16 %v2427
        %v2464 = vunpack.c.l.b16 %v2428
        %v2465 = vunpack.c.l.b16 %v2429
        %v2466 = vunpack.c.l.b16 %v2430
        %v2467 = vunpack.c.l.b16 %v2431
        %v2468 = vunpack.c.l.b16 %v2432
        %v2469 = vunpack.c.l.b16 %v2433
        %v2470 = vunpack.c.l.b16 %v2434
        %v2471 = vpack.c.b16 %v2456, %v2455
        %v2472 = vpack.c.b16 %v2458, %v2457
        %v2473 = vpack.c.b16 %v2460, %v2459
        %v2474 = vpack.c.b16 %v2462, %v2461
        %v2475 = vpack.c.b16 %v2464, %v2463
        %v2476 = vpack.c.b16 %v2466, %v2465
        %v2477 = vpack.c.b16 %v2468, %v2467
        %v2478 = vpack.c.b16 %v2470, %v2469
        %2487 = vmatpush.bf16.msra.mxu0 %v2478
        %2488 = vmatpush.bf16.msra.mxu0 %v2477
        %2489 = vmatpush.bf16.msra.mxu0 %v2476
        %2490 = vmatpush.bf16.msra.mxu0 %v2475
        %2491 = vmatpush.bf16.msra.mxu0 %v2474
        %2492 = vmatpush.bf16.msra.mxu0 %v2473
        %2493 = vmatpush.bf16.msra.mxu0 %v2472
        %2494 = vmatpush.bf16.msra.mxu0 %v2471
        %2495 = vmatmul.bf16.gmra.mxu0 %v2418
        %v2496 = vpop.f32.mrf.mxu0
        %v2497 = vadd.f32 %v2437, %v2496
        %v2498 = vpop.f32.mrf.mxu0
        %v2499 = vadd.f32 %v2437, %v2498
        %2500 = vdwg.mxu0
        %v2501 = vmax.f32 %v2497, 0.0
        %v2502 = vmax.f32 %v2499, 0.0
        %2503 = vst [vmem:[%s630] sm:$0xff] %v2501
        %2504 = vst [vmem:[%s630 + $0x8] sm:$0xff] %v2502
        %s2505 = sand.u32 %s364, 1
        %s2506 = scalar_lea.sflag [#allocation4], %s2505
        %s2507 = sand.u32 %s364, 1
        %s2508 = smul.addr %s2507, 16
        %s2509 = scalar_lea.vmem [#allocation16], %s2508
        // Predicated region
        $region113: #{tpu_custom_call.1} parent=79 // pred_check
          %p2510 = pneg %p374
        $region114: #{tpu_custom_call.1} parent=79 // pred_check_branch
          %2512 = sbr.rel (%p2510) target = $region116
        $region115: #{tpu_custom_call.1} parent=79 // pred_region
          %2514 = vsyncadd %s2506, 0
          %s2515 = smul.addr %s36, 2
          %s2516 = smul.addr %s2515, 8
          %s2517 = scalar_lea.hbm %s15, %s2516
          %s2518 = sshll.u32 %s2509, 4
          %s2519 = int_to_ptr.vmem [resolvable:$true] %s2518
          %s2520 = sshll.u32 %s2517, 4
          %s2521 = int_to_ptr.hbm [resolvable:$true] %s2520
          %2526 = dma.vmem_to_hbm [thread:$0]  %s2519, 256, %s2521, %s2506, 128, 128, 8
        $region116: #{tpu_custom_call.1} parent=79 // pred_fallthru
          _
      $region80: #{tpu_custom_call.1} parent=5 // pred_fallthru
        _
      %p2527 = scmp.le.s32.totalorder 2, %s31
      // Predicated region
      $region117: #{tpu_custom_call.1} parent=5 // pred_check
        %p2528 = pneg %p2527
      $region118: #{tpu_custom_call.1} parent=5 // pred_check_branch
        %2530 = sbr.rel (%p2528) target = $region120
      $region119: #{tpu_custom_call.1} parent=5 // pred_region
        %s2531 = ssub.s32 %s31, 2
        // Predicated region
        $region121: #{tpu_custom_call.1} parent=119 // pred_check
          %p2532 = pneg %p380
        $region122: #{tpu_custom_call.1} parent=119 // pred_check_branch
          %2534 = sbr.rel (%p2532) target = $region124
        $region123: #{tpu_custom_call.1} parent=119 // pred_region
          %s2535 = sand.u32 %s365, 1
          %s2536 = scalar_lea.sflag [#allocation4], %s2535
          %s2537 = sand.u32 %s365, 1
          %s2538 = smul.addr %s2537, 16
          %s2539 = scalar_lea.vmem [#allocation16], %s2538
          %2541 = dma.done %s2536, 256
        $region124: #{tpu_custom_call.1} parent=119 // pred_fallthru
          _
      $region120: #{tpu_custom_call.1} parent=5 // pred_fallthru
        _
    $region6: #{tpu_custom_call.1} parent=1 // loop_footer
      %s35 = sadd.s32 1, %s31
    $region7: #{tpu_custom_call.1} parent=1 // loop_footer_branch
      %30 = sbr.rel target = $region3
    $region8: #{tpu_custom_call.1} parent=1 // loop_exit
      _
    %2542 = vsyncpa [#allocation3], 1
    %s2543 = scalar_lea.sflag [#allocation3], 1
    %2544 = vsyncpa %s2543, 1
    %2545 = vsyncpa [#allocation6], 1
    %2546 = vsyncpa [#allocation9], 1
    %2547 = vsyncpa [#allocation12], 1
    %2548 = vsyncpa [#allocation15], 1
    %2549 = vsyncpa [#allocation4], 1
    %s2550 = scalar_lea.sflag [#allocation4], 1
    %2551 = vsyncpa %s2550, 1

</llo_original>
